<compile_context>
chip_gen: v6e
topology: v6e:2x2x1
jax: 0.10.0
libtpu: 0.0.40
codegen_flags: <defaults>
</compile_context>

<pallas_src>
import jax
import jax.numpy as jnp
import numpy as np
from jax.experimental import pallas as pl
from jax.experimental.pallas import tpu as pltpu


# ---------------------------------------------------------------------------
# Fused encoder kernel (one batch element per grid step).
# Activations are lane-packed as (H, W*C).
# ---------------------------------------------------------------------------

def _build_encoder_kernel(dims):
    """dims: list of (H, W, Cin, Cout) per conv layer; 2x2 pool between layers."""
    n_layers = len(dims)

    def kernel(*refs):
        x_ref = refs[0]
        w_refs = [refs[1 + 2 * i] for i in range(n_layers)]      # (3,(W+2)*Cin,W*Cout)
        b_refs = [refs[2 + 2 * i] for i in range(n_layers)]      # (1, W*Cout)
        out_refs = list(refs[1 + 2 * n_layers:1 + 3 * n_layers])  # (H, W*Cout)
        pad_refs = list(refs[1 + 3 * n_layers:])                  # (H+2, (W+2)*Cin)

        # Zero-halo'd, lane-packed input of layer 0 built in VMEM scratch
        # (no jnp.pad / HBM round trip). pad layout: row r, lane = w_pad*Cin+ci.
        H0, W0, C0, _ = dims[0]
        pad_refs[0][...] = jnp.zeros_like(pad_refs[0])
        pad_refs[0][1:1 + H0, C0:C0 + W0 * C0] = x_ref[...]

        for i, (H, W, Cin, Cout) in enumerate(dims):
            pad = pad_refs[i]
            # conv3x3 + bias + ReLU == 3 row-band MXU matmuls (instead of 9
            # tiny per-tap matmuls with slice/reshape relayouts).
            acc = jnp.zeros((H, W * Cout), jnp.float32)
            for kh in range(3):
                acc = acc + jnp.dot(pad[kh:kh + H, :], w_refs[i][kh],
                                    preferred_element_type=jnp.float32)
            y = jnp.maximum(acc + b_refs[i][...], 0.0)
            # Lane-dense shortcut store: last dim is W*Cout (== 128 here).
            out_refs[i][...] = y.astype(out_refs[i].dtype)

            if i + 1 < n_layers:
                # Fused 2x2/stride-2 max pool, written directly into the
                # interior of the next layer's zero-halo'd pad scratch.
                Hn, Wn, Cn, _ = dims[i + 1]          # Hn=H//2, Wn=W//2, Cn=Cout
                nxt = pad_refs[i + 1]
                nxt[...] = jnp.zeros_like(nxt)
                # Row pool: strided reads of the just-written shortcut tile.
                top = out_refs[i][pl.ds(0, Hn, 2), :]
                bot = out_refs[i][pl.ds(1, Hn, 2), :]
                r = jnp.maximum(top, bot)            # (H//2, W*Cout)
                # Column pool: max of adjacent Cout-wide lane blocks, stored at
                # halo offset (+1 row, +Cout lanes) of the next pad scratch.
                for wp in range(Wn):
                    c0 = 2 * wp * Cout
                    blk = jnp.maximum(r[:, c0:c0 + Cout],
                                      r[:, c0 + Cout:c0 + 2 * Cout])
                    nxt[1:1 + Hn, (wp + 1) * Cout:(wp + 2) * Cout] = blk

    return kernel


# ---------------------------------------------------------------------------
# Wrapper: prebuilt banded weights / tiled bias + the fused pallas_call.
# ---------------------------------------------------------------------------

def _banded_conv_weights(w, out_w):
    """(3,3,Cin,Cout) conv kernel -> (3, (W+2)*Cin, W*Cout) row-band matrices.

    With the zero-padded input row r flattened as lane index (w_pad*Cin + ci):
        conv3x3(x)[h, :] = sum_kh  xpad[h+kh, :] @ M[kh]
    Built once per layer in the wrapper so the kernel issues 3 MXU matmuls
    per layer with a lane-dense (W*Cout) output.
    """
    _, _, cin, cout = w.shape
    # band[w, kw, j] = 1 iff j == w + kw
    band = jnp.stack([jnp.eye(out_w, out_w + 2, k=kw, dtype=w.dtype)
                      for kw in range(3)], axis=1)             # (W, 3, W+2)
    m = jnp.einsum('wkj,hkio->hjiwo', band, w)                 # (3, W+2, Cin, W, Cout)
    return m.reshape(3, (out_w + 2) * cin, out_w * cout)


def build_fused_encoder(conv_params, batch, height, width, dtype=jnp.float32):
    """conv_params: [(w(3,3,Cin,Cout), b(Cout,)), ...]; a 2x2/stride-2 max pool
    runs between consecutive convs. Returns (runner, dims); runner(x_packed)
    yields lane-packed shortcuts (N, H_i, W_i*Cout_i)."""
    n_layers = len(conv_params)
    dims = []
    h, w_sp = height, width
    for i, (w, _) in enumerate(conv_params):
        cin, cout = int(w.shape[2]), int(w.shape[3])
        dims.append((h, w_sp, cin, cout))
        if i + 1 < n_layers:
            # TODO(synk): PyTorch MaxPool2d(2,2) floors odd sizes; this fused
            # path assumes even H/W at every pooled stage.
            assert h % 2 == 0 and w_sp % 2 == 0, "pooled stages need even H/W"
            assert int(conv_params[i + 1][0].shape[2]) == cout
            h, w_sp = h // 2, w_sp // 2

    banded = [_banded_conv_weights(w.astype(dtype), d[1])
              for (w, _), d in zip(conv_params, dims)]
    biases = [jnp.tile(b.astype(dtype), d[1]).reshape(1, d[1] * d[3])
              for (_, b), d in zip(conv_params, dims)]

    in_specs = [pl.BlockSpec((None, dims[0][0], dims[0][1] * dims[0][2]),
                             lambda n: (n, 0, 0))]
    for wm, bt in zip(banded, biases):
        in_specs.append(pl.BlockSpec(wm.shape, lambda n: (0, 0, 0)))
        in_specs.append(pl.BlockSpec(bt.shape, lambda n: (0, 0)))

    out_specs = tuple(pl.BlockSpec((None, dh, dw * dco), lambda n: (n, 0, 0))
                      for (dh, dw, _, dco) in dims)
    out_shape = tuple(jax.ShapeDtypeStruct((batch, dh, dw * dco), dtype)
                      for (dh, dw, _, dco) in dims)
    scratch_shapes = [pltpu.VMEM((dh + 2, (dw + 2) * dci), jnp.float32)
                      for (dh, dw, dci, _) in dims]

    call = pl.pallas_call(
        _build_encoder_kernel(dims),
        out_shape=out_shape,
        grid=(batch,),
        in_specs=in_specs,
        out_specs=out_specs,
        scratch_shapes=scratch_shapes,
        compiler_params=pltpu.CompilerParams(
            # Keep the batch axis parallel so v7x's 2 TensorCores split work;
            # no effect on v5e/v6e. Scratch is re-zeroed per step, so megacore
            # scheduling cannot leave stale halos.
            dimension_semantics=("parallel",),
        ),
    )

    flat_consts = [a for pair in zip(banded, biases) for a in pair]

    def runner(x_packed):
        return call(x_packed, *flat_consts)

    return runner, dims


# ---------------------------------------------------------------------------
# Encoder (mirrors the PyTorch module; NCHW in / NCHW short-cuts out).
# ---------------------------------------------------------------------------

class ConvLayer:
    """`layer`: Conv2d(Cin, Cout, 3, padding=1) + ReLU; returns (outputs, short_cuts)."""

    def __init__(self, w, b):
        self.w = w   # (3, 3, Cin, Cout)  (HWIO)
        self.b = b   # (Cout,)


class PoolStep:
    """`step`: MaxPool2d(kernel_size=2, stride=2)."""
    pass


class Encoder:
    """Same forward semantics as the PyTorch Encoder, executed as one fused
    Pallas kernel (conv+ReLU+pool chain stays in VMEM)."""

    def __init__(self, params):
        self.steps = params[0]
        self.layers = params[1][:-1]
        self.last_layer = params[1][-1]
        self.blocks = len(self.layers)
        for idx, (step, layer) in enumerate(zip(self.steps, self.layers)):
            assert isinstance(step, PoolStep)
            setattr(self, 'step' + str(idx), step)
            setattr(self, 'layer' + str(idx), layer)
        self._conv_params = [(l.w, l.b) for l in list(self.layers) + [self.last_layer]]
        self._cache = {}

    def _forward_fn(self, batch, channels, height, width):
        key = (batch, channels, height, width)
        if key not in self._cache:
            runner, dims = build_fused_encoder(self._conv_params, batch, height, width)
            assert channels == dims[0][2]

            def fwd(x_nchw):
                # Layout plumbing (outside the kernel): NCHW -> lane-packed (N, H, W*C).
                xp = jnp.transpose(x_nchw, (0, 2, 3, 1)).reshape(
                    batch, height, width * channels)
                packed = runner(xp)
                outs = []
                for s, (dh, dw, _, dco) in zip(packed, dims):
                    # Back to NCHW for PyTorch parity (downstream could consume
                    # the lane-packed NHWC form directly to skip this transpose).
                    outs.append(jnp.transpose(s.reshape(batch, dh, dw, dco),
                                              (0, 3, 1, 2)))
                return tuple(outs)

            self._cache[key] = jax.jit(fwd)
        return self._cache[key]

    def forward(self, inputs_nchw):
        n, c, h, w = inputs_nchw.shape
        return self._forward_fn(n, c, h, w)(inputs_nchw)

    __call__ = forward


# ---------------------------------------------------------------------------
# Pure-JAX (XLA) reference of the same forward pass, for verification.
# ---------------------------------------------------------------------------

def _reference_encoder(x_nchw, conv_params):
    x = jnp.transpose(x_nchw, (0, 2, 3, 1))
    shortcuts = []
    for i, (w, b) in enumerate(conv_params):
        y = jax.lax.conv_general_dilated(
            x, w, window_strides=(1, 1), padding='SAME',
            dimension_numbers=('NHWC', 'HWIO', 'NHWC'))
        y = jnp.maximum(y + b, 0.0)
        shortcuts.append(jnp.transpose(y, (0, 3, 1, 2)))
        if i + 1 < len(conv_params):
            n, h, w_sp, c = y.shape
            x = jnp.max(y.reshape(n, h // 2, 2, w_sp // 2, 2, c), axis=(2, 4))
    return tuple(shortcuts)


# ------------------------------- main --------------------------------------

def _init_conv(key, cin, cout):
    kw, kb = jax.random.split(key)
    fan_in = cin * 9
    w = jax.random.normal(kw, (3, 3, cin, cout), jnp.float32) * (fan_in ** -0.5)
    b = jax.random.normal(kb, (cout,), jnp.float32) * 0.01
    return w, b


if __name__ == "__main__":
    key = jax.random.PRNGKey(0)
    k_x, k0, k1, k2 = jax.random.split(key, 4)

    # Input: batch=2, channels=4, spatial=16x16 (NCHW, PyTorch convention).
    x = jax.random.normal(k_x, (2, 4, 16, 16), jnp.float32)

    # Channel progression 4 -> 8 -> 16 -> 32; two pooled blocks + last layer.
    w0, b0 = _init_conv(k0, 4, 8)
    w1, b1 = _init_conv(k1, 8, 16)
    w2, b2 = _init_conv(k2, 16, 32)

    steps = [PoolStep(), PoolStep()]
    layers = [ConvLayer(w0, b0), ConvLayer(w1, b1), ConvLayer(w2, b2)]

    enc = Encoder((steps, layers))
    outs = jax.block_until_ready(enc.forward(x))

    # Expected short-cut shapes (NCHW): (2,8,16,16), (2,16,8,8), (2,32,4,4)
    assert outs[0].shape == (2, 8, 16, 16)
    assert outs[1].shape == (2, 16, 8, 8)
    assert outs[2].shape == (2, 32, 4, 4)

    # Numerical parity with a pure-JAX/XLA reference of the same forward pass.
    refs = _reference_encoder(x, [(w0, b0), (w1, b1), (w2, b2)])
    for got, want in zip(outs, refs):
        np.testing.assert_allclose(np.asarray(got), np.asarray(want),
                                   rtol=1e-4, atol=1e-4)

    print("KERNEL_OK")
</pallas_src>

<mosaic_0001>
module attributes {stable_mosaic.version = 11 : i64} {
  func.func @kernel(%arg0: i32, %arg1: memref<1x16x64xf32, #tpu.memory_space<vmem>>, %arg2: memref<3x72x128xf32, #tpu.memory_space<vmem>>, %arg3: memref<1x128xf32, #tpu.memory_space<vmem>>, %arg4: memref<3x80x128xf32, #tpu.memory_space<vmem>>, %arg5: memref<1x128xf32, #tpu.memory_space<vmem>>, %arg6: memref<3x96x128xf32, #tpu.memory_space<vmem>>, %arg7: memref<1x128xf32, #tpu.memory_space<vmem>>, %arg8: memref<1x16x128xf32, #tpu.memory_space<vmem>>, %arg9: memref<1x8x128xf32, #tpu.memory_space<vmem>>, %arg10: memref<1x4x128xf32, #tpu.memory_space<vmem>>, %arg11: memref<18x72xf32, #tpu.memory_space<vmem>>, %arg12: memref<10x80xf32, #tpu.memory_space<vmem>>, %arg13: memref<6x96xf32, #tpu.memory_space<vmem>>) attributes {dimension_semantics = [#tpu.dimension_semantics<parallel>], iteration_bounds = array<i64: 2>, scalar_prefetch = 0 : i64, scratch_operands = 3 : i64, tpu.core_type = #tpu.core_type<tc>, window_params = [{transform_indices = @transform_0, window_bounds = array<i64: 1, 16, 64>}, {pipeline_mode = #tpu.pipeline_mode<synchronous>, transform_indices = @transform_1, window_bounds = array<i64: 3, 72, 128>}, {pipeline_mode = #tpu.pipeline_mode<synchronous>, transform_indices = @transform_2, window_bounds = array<i64: 1, 128>}, {pipeline_mode = #tpu.pipeline_mode<synchronous>, transform_indices = @transform_3, window_bounds = array<i64: 3, 80, 128>}, {pipeline_mode = #tpu.pipeline_mode<synchronous>, transform_indices = @transform_4, window_bounds = array<i64: 1, 128>}, {pipeline_mode = #tpu.pipeline_mode<synchronous>, transform_indices = @transform_5, window_bounds = array<i64: 3, 96, 128>}, {pipeline_mode = #tpu.pipeline_mode<synchronous>, transform_indices = @transform_6, window_bounds = array<i64: 1, 128>}, {transform_indices = @transform_7, window_bounds = array<i64: 1, 16, 128>}, {transform_indices = @transform_8, window_bounds = array<i64: 1, 8, 128>}, {transform_indices = @transform_9, window_bounds = array<i64: 1, 4, 128>}]} {
    %cst = arith.constant 0.000000e+00 : f32
    %0 = vector.broadcast %cst : f32 to vector<18x72xf32>
    %c0 = arith.constant 0 : index
    %c0_0 = arith.constant 0 : index
    %1 = vector.load %arg11[%c0, %c0_0] : memref<18x72xf32, #tpu.memory_space<vmem>>, vector<18x72xf32>
    tpu.vector_store %arg11[%c0, %c0_0], %0 {strides = array<i32>} : memref<18x72xf32, #tpu.memory_space<vmem>>, vector<18x72xf32>,
    %c0_1 = arith.constant 0 : index
    %c0_2 = arith.constant 0 : index
    %c0_3 = arith.constant 0 : index
    %2 = vector.load %arg1[%c0_1, %c0_2, %c0_3] : memref<1x16x64xf32, #tpu.memory_space<vmem>>, vector<1x16x64xf32>
    %3 = vector.shape_cast %2 : vector<1x16x64xf32> to vector<16x64xf32>
    %c1 = arith.constant 1 : index
    %c4 = arith.constant 4 : index
    %4 = vector.load %arg11[%c1, %c4] : memref<18x72xf32, #tpu.memory_space<vmem>>, vector<16x64xf32>
    tpu.vector_store %arg11[%c1, %c4], %3 {strides = array<i32>} : memref<18x72xf32, #tpu.memory_space<vmem>>, vector<16x64xf32>,
    %cst_4 = arith.constant 0.000000e+00 : f32
    %5 = vector.broadcast %cst_4 : f32 to vector<16x128xf32>
    %c0_5 = arith.constant 0 : index
    %c0_6 = arith.constant 0 : index
    %6 = vector.load %arg11[%c0_5, %c0_6] : memref<18x72xf32, #tpu.memory_space<vmem>>, vector<16x72xf32>
    %c0_7 = arith.constant 0 : index
    %c0_8 = arith.constant 0 : index
    %c0_9 = arith.constant 0 : index
    %7 = vector.load %arg2[%c0_7, %c0_8, %c0_9] : memref<3x72x128xf32, #tpu.memory_space<vmem>>, vector<1x72x128xf32>
    %8 = vector.shape_cast %7 : vector<1x72x128xf32> to vector<72x128xf32>
    %cst_10 = arith.constant dense<0.000000e+00> : vector<16x128xf32>
    %9 = tpu.matmul %6, %8, %cst_10 {dimension_numbers = #tpu.dot_dimension_numbers<[1], [0], [0], [1], [0, 0, 1, 1], [], []>} : vector<16x72xf32>, vector<72x128xf32>, vector<16x128xf32> -> vector<16x128xf32>
    %10 = arith.addf %5, %9 : vector<16x128xf32>
    %c1_11 = arith.constant 1 : index
    %c0_12 = arith.constant 0 : index
    %11 = vector.load %arg11[%c1_11, %c0_12] : memref<18x72xf32, #tpu.memory_space<vmem>>, vector<16x72xf32>
    %c1_13 = arith.constant 1 : index
    %c0_14 = arith.constant 0 : index
    %c0_15 = arith.constant 0 : index
    %12 = vector.load %arg2[%c1_13, %c0_14, %c0_15] : memref<3x72x128xf32, #tpu.memory_space<vmem>>, vector<1x72x128xf32>
    %13 = vector.shape_cast %12 : vector<1x72x128xf32> to vector<72x128xf32>
    %cst_16 = arith.constant dense<0.000000e+00> : vector<16x128xf32>
    %14 = tpu.matmul %11, %13, %cst_16 {dimension_numbers = #tpu.dot_dimension_numbers<[1], [0], [0], [1], [0, 0, 1, 1], [], []>} : vector<16x72xf32>, vector<72x128xf32>, vector<16x128xf32> -> vector<16x128xf32>
    %15 = arith.addf %10, %14 : vector<16x128xf32>
    %c2 = arith.constant 2 : index
    %c0_17 = arith.constant 0 : index
    %16 = vector.load %arg11[%c2, %c0_17] : memref<18x72xf32, #tpu.memory_space<vmem>>, vector<16x72xf32>
    %c2_18 = arith.constant 2 : index
    %c0_19 = arith.constant 0 : index
    %c0_20 = arith.constant 0 : index
    %17 = vector.load %arg2[%c2_18, %c0_19, %c0_20] : memref<3x72x128xf32, #tpu.memory_space<vmem>>, vector<1x72x128xf32>
    %18 = vector.shape_cast %17 : vector<1x72x128xf32> to vector<72x128xf32>
    %cst_21 = arith.constant dense<0.000000e+00> : vector<16x128xf32>
    %19 = tpu.matmul %16, %18, %cst_21 {dimension_numbers = #tpu.dot_dimension_numbers<[1], [0], [0], [1], [0, 0, 1, 1], [], []>} : vector<16x72xf32>, vector<72x128xf32>, vector<16x128xf32> -> vector<16x128xf32>
    %20 = arith.addf %15, %19 : vector<16x128xf32>
    %c0_22 = arith.constant 0 : index
    %c0_23 = arith.constant 0 : index
    %21 = vector.load %arg3[%c0_22, %c0_23] : memref<1x128xf32, #tpu.memory_space<vmem>>, vector<1x128xf32>
    %22 = vector.broadcast %21 : vector<1x128xf32> to vector<16x128xf32>
    %23 = arith.addf %20, %22 : vector<16x128xf32>
    %cst_24 = arith.constant 0.000000e+00 : f32
    %24 = vector.broadcast %cst_24 : f32 to vector<16x128xf32>
    %25 = arith.maximumf %23, %24 : vector<16x128xf32>
    %c0_25 = arith.constant 0 : index
    %c0_26 = arith.constant 0 : index
    %c0_27 = arith.constant 0 : index
    %26 = vector.load %arg8[%c0_25, %c0_26, %c0_27] : memref<1x16x128xf32, #tpu.memory_space<vmem>>, vector<1x16x128xf32>
    %27 = vector.shape_cast %26 : vector<1x16x128xf32> to vector<16x128xf32>
    %28 = vector.shape_cast %25 : vector<16x128xf32> to vector<1x16x128xf32>
    tpu.vector_store %arg8[%c0_25, %c0_26, %c0_27], %28 {strides = array<i32>} : memref<1x16x128xf32, #tpu.memory_space<vmem>>, vector<1x16x128xf32>,
    %cst_28 = arith.constant 0.000000e+00 : f32
    %29 = vector.broadcast %cst_28 : f32 to vector<10x80xf32>
    %c0_29 = arith.constant 0 : index
    %c0_30 = arith.constant 0 : index
    %30 = vector.load %arg12[%c0_29, %c0_30] : memref<10x80xf32, #tpu.memory_space<vmem>>, vector<10x80xf32>
    tpu.vector_store %arg12[%c0_29, %c0_30], %29 {strides = array<i32>} : memref<10x80xf32, #tpu.memory_space<vmem>>, vector<10x80xf32>,
    %c0_31 = arith.constant 0 : index
    %c0_32 = arith.constant 0 : index
    %c0_33 = arith.constant 0 : index
    %31 = tpu.strided_load %arg8[%c0_31, %c0_32, %c0_33] {strides = array<i32: 1, 2, 1>} : memref<1x16x128xf32, #tpu.memory_space<vmem>>, vector<1x8x128xf32>
    %32 = vector.shape_cast %31 : vector<1x8x128xf32> to vector<8x128xf32>
    %c0_34 = arith.constant 0 : index
    %c1_35 = arith.constant 1 : index
    %c0_36 = arith.constant 0 : index
    %33 = tpu.strided_load %arg8[%c0_34, %c1_35, %c0_36] {strides = array<i32: 1, 2, 1>} : memref<1x16x128xf32, #tpu.memory_space<vmem>>, vector<1x8x128xf32>
    %34 = vector.shape_cast %33 : vector<1x8x128xf32> to vector<8x128xf32>
    %35 = arith.maximumf %32, %34 : vector<8x128xf32>
    %36 = vector.extract_strided_slice %35 {offsets = [0, 0], sizes = [8, 8], strides = [1, 1]} : vector<8x128xf32> to vector<8x8xf32>
    %37 = vector.extract_strided_slice %35 {offsets = [0, 8], sizes = [8, 8], strides = [1, 1]} : vector<8x128xf32> to vector<8x8xf32>
    %38 = arith.maximumf %36, %37 : vector<8x8xf32>
    %c1_37 = arith.constant 1 : index
    %c8 = arith.constant 8 : index
    %39 = vector.load %arg12[%c1_37, %c8] : memref<10x80xf32, #tpu.memory_space<vmem>>, vector<8x8xf32>
    tpu.vector_store %arg12[%c1_37, %c8], %38 {strides = array<i32>} : memref<10x80xf32, #tpu.memory_space<vmem>>, vector<8x8xf32>,
    %40 = vector.extract_strided_slice %35 {offsets = [0, 16], sizes = [8, 8], strides = [1, 1]} : vector<8x128xf32> to vector<8x8xf32>
    %41 = vector.extract_strided_slice %35 {offsets = [0, 24], sizes = [8, 8], strides = [1, 1]} : vector<8x128xf32> to vector<8x8xf32>
    %42 = arith.maximumf %40, %41 : vector<8x8xf32>
    %c1_38 = arith.constant 1 : index
    %c16 = arith.constant 16 : index
    %43 = vector.load %arg12[%c1_38, %c16] : memref<10x80xf32, #tpu.memory_space<vmem>>, vector<8x8xf32>
    tpu.vector_store %arg12[%c1_38, %c16], %42 {strides = array<i32>} : memref<10x80xf32, #tpu.memory_space<vmem>>, vector<8x8xf32>,
    %44 = vector.extract_strided_slice %35 {offsets = [0, 32], sizes = [8, 8], strides = [1, 1]} : vector<8x128xf32> to vector<8x8xf32>
    %45 = vector.extract_strided_slice %35 {offsets = [0, 40], sizes = [8, 8], strides = [1, 1]} : vector<8x128xf32> to vector<8x8xf32>
    %46 = arith.maximumf %44, %45 : vector<8x8xf32>
    %c1_39 = arith.constant 1 : index
    %c24 = arith.constant 24 : index
    %47 = vector.load %arg12[%c1_39, %c24] : memref<10x80xf32, #tpu.memory_space<vmem>>, vector<8x8xf32>
    tpu.vector_store %arg12[%c1_39, %c24], %46 {strides = array<i32>} : memref<10x80xf32, #tpu.memory_space<vmem>>, vector<8x8xf32>,
    %48 = vector.extract_strided_slice %35 {offsets = [0, 48], sizes = [8, 8], strides = [1, 1]} : vector<8x128xf32> to vector<8x8xf32>
    %49 = vector.extract_strided_slice %35 {offsets = [0, 56], sizes = [8, 8], strides = [1, 1]} : vector<8x128xf32> to vector<8x8xf32>
    %50 = arith.maximumf %48, %49 : vector<8x8xf32>
    %c1_40 = arith.constant 1 : index
    %c32 = arith.constant 32 : index
    %51 = vector.load %arg12[%c1_40, %c32] : memref<10x80xf32, #tpu.memory_space<vmem>>, vector<8x8xf32>
    tpu.vector_store %arg12[%c1_40, %c32], %50 {strides = array<i32>} : memref<10x80xf32, #tpu.memory_space<vmem>>, vector<8x8xf32>,
    %52 = vector.extract_strided_slice %35 {offsets = [0, 64], sizes = [8, 8], strides = [1, 1]} : vector<8x128xf32> to vector<8x8xf32>
    %53 = vector.extract_strided_slice %35 {offsets = [0, 72], sizes = [8, 8], strides = [1, 1]} : vector<8x128xf32> to vector<8x8xf32>
    %54 = arith.maximumf %52, %53 : vector<8x8xf32>
    %c1_41 = arith.constant 1 : index
    %c40 = arith.constant 40 : index
    %55 = vector.load %arg12[%c1_41, %c40] : memref<10x80xf32, #tpu.memory_space<vmem>>, vector<8x8xf32>
    tpu.vector_store %arg12[%c1_41, %c40], %54 {strides = array<i32>} : memref<10x80xf32, #tpu.memory_space<vmem>>, vector<8x8xf32>,
    %56 = vector.extract_strided_slice %35 {offsets = [0, 80], sizes = [8, 8], strides = [1, 1]} : vector<8x128xf32> to vector<8x8xf32>
    %57 = vector.extract_strided_slice %35 {offsets = [0, 88], sizes = [8, 8], strides = [1, 1]} : vector<8x128xf32> to vector<8x8xf32>
    %58 = arith.maximumf %56, %57 : vector<8x8xf32>
    %c1_42 = arith.constant 1 : index
    %c48 = arith.constant 48 : index
    %59 = vector.load %arg12[%c1_42, %c48] : memref<10x80xf32, #tpu.memory_space<vmem>>, vector<8x8xf32>
    tpu.vector_store %arg12[%c1_42, %c48], %58 {strides = array<i32>} : memref<10x80xf32, #tpu.memory_space<vmem>>, vector<8x8xf32>,
    %60 = vector.extract_strided_slice %35 {offsets = [0, 96], sizes = [8, 8], strides = [1, 1]} : vector<8x128xf32> to vector<8x8xf32>
    %61 = vector.extract_strided_slice %35 {offsets = [0, 104], sizes = [8, 8], strides = [1, 1]} : vector<8x128xf32> to vector<8x8xf32>
    %62 = arith.maximumf %60, %61 : vector<8x8xf32>
    %c1_43 = arith.constant 1 : index
    %c56 = arith.constant 56 : index
    %63 = vector.load %arg12[%c1_43, %c56] : memref<10x80xf32, #tpu.memory_space<vmem>>, vector<8x8xf32>
    tpu.vector_store %arg12[%c1_43, %c56], %62 {strides = array<i32>} : memref<10x80xf32, #tpu.memory_space<vmem>>, vector<8x8xf32>,
    %64 = vector.extract_strided_slice %35 {offsets = [0, 112], sizes = [8, 8], strides = [1, 1]} : vector<8x128xf32> to vector<8x8xf32>
    %65 = vector.extract_strided_slice %35 {offsets = [0, 120], sizes = [8, 8], strides = [1, 1]} : vector<8x128xf32> to vector<8x8xf32>
    %66 = arith.maximumf %64, %65 : vector<8x8xf32>
    %c1_44 = arith.constant 1 : index
    %c64 = arith.constant 64 : index
    %67 = vector.load %arg12[%c1_44, %c64] : memref<10x80xf32, #tpu.memory_space<vmem>>, vector<8x8xf32>
    tpu.vector_store %arg12[%c1_44, %c64], %66 {strides = array<i32>} : memref<10x80xf32, #tpu.memory_space<vmem>>, vector<8x8xf32>,
    %cst_45 = arith.constant 0.000000e+00 : f32
    %68 = vector.broadcast %cst_45 : f32 to vector<8x128xf32>
    %c0_46 = arith.constant 0 : index
    %c0_47 = arith.constant 0 : index
    %69 = vector.load %arg12[%c0_46, %c0_47] : memref<10x80xf32, #tpu.memory_space<vmem>>, vector<8x80xf32>
    %c0_48 = arith.constant 0 : index
    %c0_49 = arith.constant 0 : index
    %c0_50 = arith.constant 0 : index
    %70 = vector.load %arg4[%c0_48, %c0_49, %c0_50] : memref<3x80x128xf32, #tpu.memory_space<vmem>>, vector<1x80x128xf32>
    %71 = vector.shape_cast %70 : vector<1x80x128xf32> to vector<80x128xf32>
    %cst_51 = arith.constant dense<0.000000e+00> : vector<8x128xf32>
    %72 = tpu.matmul %69, %71, %cst_51 {dimension_numbers = #tpu.dot_dimension_numbers<[1], [0], [0], [1], [0, 0, 1, 1], [], []>} : vector<8x80xf32>, vector<80x128xf32>, vector<8x128xf32> -> vector<8x128xf32>
    %73 = arith.addf %68, %72 : vector<8x128xf32>
    %c1_52 = arith.constant 1 : index
    %c0_53 = arith.constant 0 : index
    %74 = vector.load %arg12[%c1_52, %c0_53] : memref<10x80xf32, #tpu.memory_space<vmem>>, vector<8x80xf32>
    %c1_54 = arith.constant 1 : index
    %c0_55 = arith.constant 0 : index
    %c0_56 = arith.constant 0 : index
    %75 = vector.load %arg4[%c1_54, %c0_55, %c0_56] : memref<3x80x128xf32, #tpu.memory_space<vmem>>, vector<1x80x128xf32>
    %76 = vector.shape_cast %75 : vector<1x80x128xf32> to vector<80x128xf32>
    %cst_57 = arith.constant dense<0.000000e+00> : vector<8x128xf32>
    %77 = tpu.matmul %74, %76, %cst_57 {dimension_numbers = #tpu.dot_dimension_numbers<[1], [0], [0], [1], [0, 0, 1, 1], [], []>} : vector<8x80xf32>, vector<80x128xf32>, vector<8x128xf32> -> vector<8x128xf32>
    %78 = arith.addf %73, %77 : vector<8x128xf32>
    %c2_58 = arith.constant 2 : index
    %c0_59 = arith.constant 0 : index
    %79 = vector.load %arg12[%c2_58, %c0_59] : memref<10x80xf32, #tpu.memory_space<vmem>>, vector<8x80xf32>
    %c2_60 = arith.constant 2 : index
    %c0_61 = arith.constant 0 : index
    %c0_62 = arith.constant 0 : index
    %80 = vector.load %arg4[%c2_60, %c0_61, %c0_62] : memref<3x80x128xf32, #tpu.memory_space<vmem>>, vector<1x80x128xf32>
    %81 = vector.shape_cast %80 : vector<1x80x128xf32> to vector<80x128xf32>
    %cst_63 = arith.constant dense<0.000000e+00> : vector<8x128xf32>
    %82 = tpu.matmul %79, %81, %cst_63 {dimension_numbers = #tpu.dot_dimension_numbers<[1], [0], [0], [1], [0, 0, 1, 1], [], []>} : vector<8x80xf32>, vector<80x128xf32>, vector<8x128xf32> -> vector<8x128xf32>
    %83 = arith.addf %78, %82 : vector<8x128xf32>
    %c0_64 = arith.constant 0 : index
    %c0_65 = arith.constant 0 : index
    %84 = vector.load %arg5[%c0_64, %c0_65] : memref<1x128xf32, #tpu.memory_space<vmem>>, vector<1x128xf32>
    %85 = vector.broadcast %84 : vector<1x128xf32> to vector<8x128xf32>
    %86 = arith.addf %83, %85 : vector<8x128xf32>
    %cst_66 = arith.constant 0.000000e+00 : f32
    %87 = vector.broadcast %cst_66 : f32 to vector<8x128xf32>
    %88 = arith.maximumf %86, %87 : vector<8x128xf32>
    %c0_67 = arith.constant 0 : index
    %c0_68 = arith.constant 0 : index
    %c0_69 = arith.constant 0 : index
    %89 = vector.load %arg9[%c0_67, %c0_68, %c0_69] : memref<1x8x128xf32, #tpu.memory_space<vmem>>, vector<1x8x128xf32>
    %90 = vector.shape_cast %89 : vector<1x8x128xf32> to vector<8x128xf32>
    %91 = vector.shape_cast %88 : vector<8x128xf32> to vector<1x8x128xf32>
    tpu.vector_store %arg9[%c0_67, %c0_68, %c0_69], %91 {strides = array<i32>} : memref<1x8x128xf32, #tpu.memory_space<vmem>>, vector<1x8x128xf32>,
    %cst_70 = arith.constant 0.000000e+00 : f32
    %92 = vector.broadcast %cst_70 : f32 to vector<6x96xf32>
    %c0_71 = arith.constant 0 : index
    %c0_72 = arith.constant 0 : index
    %93 = vector.load %arg13[%c0_71, %c0_72] : memref<6x96xf32, #tpu.memory_space<vmem>>, vector<6x96xf32>
    tpu.vector_store %arg13[%c0_71, %c0_72], %92 {strides = array<i32>} : memref<6x96xf32, #tpu.memory_space<vmem>>, vector<6x96xf32>,
    %c0_73 = arith.constant 0 : index
    %c0_74 = arith.constant 0 : index
    %c0_75 = arith.constant 0 : index
    %94 = tpu.strided_load %arg9[%c0_73, %c0_74, %c0_75] {strides = array<i32: 1, 2, 1>} : memref<1x8x128xf32, #tpu.memory_space<vmem>>, vector<1x4x128xf32>
    %95 = vector.shape_cast %94 : vector<1x4x128xf32> to vector<4x128xf32>
    %c0_76 = arith.constant 0 : index
    %c1_77 = arith.constant 1 : index
    %c0_78 = arith.constant 0 : index
    %96 = tpu.strided_load %arg9[%c0_76, %c1_77, %c0_78] {strides = array<i32: 1, 2, 1>} : memref<1x8x128xf32, #tpu.memory_space<vmem>>, vector<1x4x128xf32>
    %97 = vector.shape_cast %96 : vector<1x4x128xf32> to vector<4x128xf32>
    %98 = arith.maximumf %95, %97 : vector<4x128xf32>
    %99 = vector.extract_strided_slice %98 {offsets = [0, 0], sizes = [4, 16], strides = [1, 1]} : vector<4x128xf32> to vector<4x16xf32>
    %100 = vector.extract_strided_slice %98 {offsets = [0, 16], sizes = [4, 16], strides = [1, 1]} : vector<4x128xf32> to vector<4x16xf32>
    %101 = arith.maximumf %99, %100 : vector<4x16xf32>
    %c1_79 = arith.constant 1 : index
    %c16_80 = arith.constant 16 : index
    %102 = vector.load %arg13[%c1_79, %c16_80] : memref<6x96xf32, #tpu.memory_space<vmem>>, vector<4x16xf32>
    tpu.vector_store %arg13[%c1_79, %c16_80], %101 {strides = array<i32>} : memref<6x96xf32, #tpu.memory_space<vmem>>, vector<4x16xf32>,
    %103 = vector.extract_strided_slice %98 {offsets = [0, 32], sizes = [4, 16], strides = [1, 1]} : vector<4x128xf32> to vector<4x16xf32>
    %104 = vector.extract_strided_slice %98 {offsets = [0, 48], sizes = [4, 16], strides = [1, 1]} : vector<4x128xf32> to vector<4x16xf32>
    %105 = arith.maximumf %103, %104 : vector<4x16xf32>
    %c1_81 = arith.constant 1 : index
    %c32_82 = arith.constant 32 : index
    %106 = vector.load %arg13[%c1_81, %c32_82] : memref<6x96xf32, #tpu.memory_space<vmem>>, vector<4x16xf32>
    tpu.vector_store %arg13[%c1_81, %c32_82], %105 {strides = array<i32>} : memref<6x96xf32, #tpu.memory_space<vmem>>, vector<4x16xf32>,
    %107 = vector.extract_strided_slice %98 {offsets = [0, 64], sizes = [4, 16], strides = [1, 1]} : vector<4x128xf32> to vector<4x16xf32>
    %108 = vector.extract_strided_slice %98 {offsets = [0, 80], sizes = [4, 16], strides = [1, 1]} : vector<4x128xf32> to vector<4x16xf32>
    %109 = arith.maximumf %107, %108 : vector<4x16xf32>
    %c1_83 = arith.constant 1 : index
    %c48_84 = arith.constant 48 : index
    %110 = vector.load %arg13[%c1_83, %c48_84] : memref<6x96xf32, #tpu.memory_space<vmem>>, vector<4x16xf32>
    tpu.vector_store %arg13[%c1_83, %c48_84], %109 {strides = array<i32>} : memref<6x96xf32, #tpu.memory_space<vmem>>, vector<4x16xf32>,
    %111 = vector.extract_strided_slice %98 {offsets = [0, 96], sizes = [4, 16], strides = [1, 1]} : vector<4x128xf32> to vector<4x16xf32>
    %112 = vector.extract_strided_slice %98 {offsets = [0, 112], sizes = [4, 16], strides = [1, 1]} : vector<4x128xf32> to vector<4x16xf32>
    %113 = arith.maximumf %111, %112 : vector<4x16xf32>
    %c1_85 = arith.constant 1 : index
    %c64_86 = arith.constant 64 : index
    %114 = vector.load %arg13[%c1_85, %c64_86] : memref<6x96xf32, #tpu.memory_space<vmem>>, vector<4x16xf32>
    tpu.vector_store %arg13[%c1_85, %c64_86], %113 {strides = array<i32>} : memref<6x96xf32, #tpu.memory_space<vmem>>, vector<4x16xf32>,
    %cst_87 = arith.constant 0.000000e+00 : f32
    %115 = vector.broadcast %cst_87 : f32 to vector<4x128xf32>
    %c0_88 = arith.constant 0 : index
    %c0_89 = arith.constant 0 : index
    %116 = vector.load %arg13[%c0_88, %c0_89] : memref<6x96xf32, #tpu.memory_space<vmem>>, vector<4x96xf32>
    %c0_90 = arith.constant 0 : index
    %c0_91 = arith.constant 0 : index
    %c0_92 = arith.constant 0 : index
    %117 = vector.load %arg6[%c0_90, %c0_91, %c0_92] : memref<3x96x128xf32, #tpu.memory_space<vmem>>, vector<1x96x128xf32>
    %118 = vector.shape_cast %117 : vector<1x96x128xf32> to vector<96x128xf32>
    %cst_93 = arith.constant dense<0.000000e+00> : vector<4x128xf32>
    %119 = tpu.matmul %116, %118, %cst_93 {dimension_numbers = #tpu.dot_dimension_numbers<[1], [0], [0], [1], [0, 0, 1, 1], [], []>} : vector<4x96xf32>, vector<96x128xf32>, vector<4x128xf32> -> vector<4x128xf32>
    %120 = arith.addf %115, %119 : vector<4x128xf32>
    %c1_94 = arith.constant 1 : index
    %c0_95 = arith.constant 0 : index
    %121 = vector.load %arg13[%c1_94, %c0_95] : memref<6x96xf32, #tpu.memory_space<vmem>>, vector<4x96xf32>
    %c1_96 = arith.constant 1 : index
    %c0_97 = arith.constant 0 : index
    %c0_98 = arith.constant 0 : index
    %122 = vector.load %arg6[%c1_96, %c0_97, %c0_98] : memref<3x96x128xf32, #tpu.memory_space<vmem>>, vector<1x96x128xf32>
    %123 = vector.shape_cast %122 : vector<1x96x128xf32> to vector<96x128xf32>
    %cst_99 = arith.constant dense<0.000000e+00> : vector<4x128xf32>
    %124 = tpu.matmul %121, %123, %cst_99 {dimension_numbers = #tpu.dot_dimension_numbers<[1], [0], [0], [1], [0, 0, 1, 1], [], []>} : vector<4x96xf32>, vector<96x128xf32>, vector<4x128xf32> -> vector<4x128xf32>
    %125 = arith.addf %120, %124 : vector<4x128xf32>
    %c2_100 = arith.constant 2 : index
    %c0_101 = arith.constant 0 : index
    %126 = vector.load %arg13[%c2_100, %c0_101] : memref<6x96xf32, #tpu.memory_space<vmem>>, vector<4x96xf32>
    %c2_102 = arith.constant 2 : index
    %c0_103 = arith.constant 0 : index
    %c0_104 = arith.constant 0 : index
    %127 = vector.load %arg6[%c2_102, %c0_103, %c0_104] : memref<3x96x128xf32, #tpu.memory_space<vmem>>, vector<1x96x128xf32>
    %128 = vector.shape_cast %127 : vector<1x96x128xf32> to vector<96x128xf32>
    %cst_105 = arith.constant dense<0.000000e+00> : vector<4x128xf32>
    %129 = tpu.matmul %126, %128, %cst_105 {dimension_numbers = #tpu.dot_dimension_numbers<[1], [0], [0], [1], [0, 0, 1, 1], [], []>} : vector<4x96xf32>, vector<96x128xf32>, vector<4x128xf32> -> vector<4x128xf32>
    %130 = arith.addf %125, %129 : vector<4x128xf32>
    %c0_106 = arith.constant 0 : index
    %c0_107 = arith.constant 0 : index
    %131 = vector.load %arg7[%c0_106, %c0_107] : memref<1x128xf32, #tpu.memory_space<vmem>>, vector<1x128xf32>
    %132 = vector.broadcast %131 : vector<1x128xf32> to vector<4x128xf32>
    %133 = arith.addf %130, %132 : vector<4x128xf32>
    %cst_108 = arith.constant 0.000000e+00 : f32
    %134 = vector.broadcast %cst_108 : f32 to vector<4x128xf32>
    %135 = arith.maximumf %133, %134 : vector<4x128xf32>
    %c0_109 = arith.constant 0 : index
    %c0_110 = arith.constant 0 : index
    %c0_111 = arith.constant 0 : index
    %136 = vector.load %arg10[%c0_109, %c0_110, %c0_111] : memref<1x4x128xf32, #tpu.memory_space<vmem>>, vector<1x4x128xf32>
    %137 = vector.shape_cast %136 : vector<1x4x128xf32> to vector<4x128xf32>
    %138 = vector.shape_cast %135 : vector<4x128xf32> to vector<1x4x128xf32>
    tpu.vector_store %arg10[%c0_109, %c0_110, %c0_111], %138 {strides = array<i32>} : memref<1x4x128xf32, #tpu.memory_space<vmem>>, vector<1x4x128xf32>,
    return
  }
  func.func @transform_0(%arg0: i32) -> (i32, i32, i32) {
    %c0_i32 = arith.constant 0 : i32
    %c0_i32_0 = arith.constant 0 : i32
    %c0_i32_1 = arith.constant 0 : i32
    return %arg0, %c0_i32, %c0_i32_0 : i32, i32, i32
  }
  func.func @transform_1(%arg0: i32) -> (i32, i32, i32) {
    %c0_i32 = arith.constant 0 : i32
    %c0_i32_0 = arith.constant 0 : i32
    %c0_i32_1 = arith.constant 0 : i32
    %c0_i32_2 = arith.constant 0 : i32
    return %c0_i32, %c0_i32_0, %c0_i32_1 : i32, i32, i32
  }
  func.func @transform_2(%arg0: i32) -> (i32, i32) {
    %c0_i32 = arith.constant 0 : i32
    %c0_i32_0 = arith.constant 0 : i32
    %c0_i32_1 = arith.constant 0 : i32
    return %c0_i32, %c0_i32_0 : i32, i32
  }
  func.func @transform_3(%arg0: i32) -> (i32, i32, i32) {
    %c0_i32 = arith.constant 0 : i32
    %c0_i32_0 = arith.constant 0 : i32
    %c0_i32_1 = arith.constant 0 : i32
    %c0_i32_2 = arith.constant 0 : i32
    return %c0_i32, %c0_i32_0, %c0_i32_1 : i32, i32, i32
  }
  func.func @transform_4(%arg0: i32) -> (i32, i32) {
    %c0_i32 = arith.constant 0 : i32
    %c0_i32_0 = arith.constant 0 : i32
    %c0_i32_1 = arith.constant 0 : i32
    return %c0_i32, %c0_i32_0 : i32, i32
  }
  func.func @transform_5(%arg0: i32) -> (i32, i32, i32) {
    %c0_i32 = arith.constant 0 : i32
    %c0_i32_0 = arith.constant 0 : i32
    %c0_i32_1 = arith.constant 0 : i32
    %c0_i32_2 = arith.constant 0 : i32
    return %c0_i32, %c0_i32_0, %c0_i32_1 : i32, i32, i32
  }
  func.func @transform_6(%arg0: i32) -> (i32, i32) {
    %c0_i32 = arith.constant 0 : i32
    %c0_i32_0 = arith.constant 0 : i32
    %c0_i32_1 = arith.constant 0 : i32
    return %c0_i32, %c0_i32_0 : i32, i32
  }
  func.func @transform_7(%arg0: i32) -> (i32, i32, i32) {
    %c0_i32 = arith.constant 0 : i32
    %c0_i32_0 = arith.constant 0 : i32
    %c0_i32_1 = arith.constant 0 : i32
    return %arg0, %c0_i32, %c0_i32_0 : i32, i32, i32
  }
  func.func @transform_8(%arg0: i32) -> (i32, i32, i32) {
    %c0_i32 = arith.constant 0 : i32
    %c0_i32_0 = arith.constant 0 : i32
    %c0_i32_1 = arith.constant 0 : i32
    return %arg0, %c0_i32, %c0_i32_0 : i32, i32, i32
  }
  func.func @transform_9(%arg0: i32) -> (i32, i32, i32) {
    %c0_i32 = arith.constant 0 : i32
    %c0_i32_0 = arith.constant 0 : i32
    %c0_i32_1 = arith.constant 0 : i32
    return %arg0, %c0_i32, %c0_i32_0 : i32, i32, i32
  }
}

</mosaic_0001>

<llo_original>
// kernel: fwd.1
$region0: #{fwd.1}
  #allocation0 [shape = 'u32[]', space=smem, size = 0x4, offset = 0x4, fixed_abs, tag = 'smem constant byte address 0x4 - core index']
  #allocation1 [shape = 'u32[144,128]{1,0:T(1,128)}', space=vmem, size = 0x12000, scoped, tag = 'internal scratch']
  #allocation2 [shape = 'f32[18,72]{1,0:T(8,128)}', space=vmem, size = 0x3000, scoped, tag = 'scratch operand']
  #allocation3 [shape = 'f32[10,80]{1,0:T(8,128)}', space=vmem, size = 0x2000, scoped, tag = 'scratch operand']
  #allocation4 [shape = 'f32[6,96]{1,0:T(8,128)}', space=vmem, size = 0x1000, scoped, tag = 'scratch operand']
  %s0 = inlined_call_operand.vmem [shape: f32[2,16,64], index: 0, kind: input, shape index: {}]
  %s1 = inlined_call_operand.hbm [shape: f32[3,72,128], index: 1, kind: input, shape index: {}]
  %s2 = inlined_call_operand.vmem [shape: f32[1,128], index: 2, kind: input, shape index: {}]
  %s3 = inlined_call_operand.hbm [shape: f32[3,80,128], index: 3, kind: input, shape index: {}]
  %s4 = inlined_call_operand.vmem [shape: f32[1,128], index: 4, kind: input, shape index: {}]
  %s5 = inlined_call_operand.vmem [shape: f32[3,96,128], index: 5, kind: input, shape index: {}]
  %s6 = inlined_call_operand.vmem [shape: f32[1,128], index: 6, kind: input, shape index: {}]
  %s7 = inlined_call_operand.vmem [shape: f32[2,16,128], index: 7, kind: output, shape index: {0}]
  %s8 = inlined_call_operand.vmem [shape: f32[2,8,128], index: 8, kind: output, shape index: {1}]
  %s9 = inlined_call_operand.vmem [shape: f32[2,4,128], index: 9, kind: output, shape index: {2}]
  %10 = xla_tuple %s7, %s8, %s9
  %s11 = sld [smem:[#allocation0]]
  $region85: #{fwd.1} parent=0
    _
  %s13 = ssub.s32 1, %s11
  %s14 = scalar_select 0, %s13, %s11
  $region1: #{fwd.1} parent=0
    #allocation5 [shape = 'u8[110592]{0}', space=vmem, size = 0x1b000, scoped, tag = 'input window, operand 1, single buffered']
    #allocation6 [shape = 's32[2]{0}', space=sflag, size = 0x8, scoped, tag = 'scoped memory for fwd.1']
    #allocation7 [shape = 'u8[122880]{0}', space=vmem, size = 0x1e000, scoped, tag = 'input window, operand 3, single buffered']
    #allocation8 [shape = 's32[1]{0}', space=sflag, size = 0x4, scoped, tag = 'scoped memory for fwd.1']
    %15 = vsyncpa [#allocation6], 0
    %16 = vsyncpa [#allocation8], 0
    loop: start=0, step=1, limit=4
    $region2: #{fwd.1} parent=1 // loop_pre_header
      _
    $region3: #{fwd.1} parent=1 // loop_header
      %s18 = sphi 0, %s22
      %p19 = scmp.ge.s32.totalorder %s18, 4
      %s28 = sphi 0, %s30
      %s31 = sphi 0, %s28
      %s32 = sphi 0, %s31
      %s48 = sphi 0, %s32
      %s52 = sphi 0, %s52
      %s54 = sphi 0, %s52
      %s55 = sphi 0, %s54
      %s69 = sphi 0, %s55
      %s73 = sphi 0, %s73
      %s75 = sphi 0, %s73
      %s76 = sphi 0, %s75
      %s90 = sphi 0, %s76
      %s94 = sphi 0, %s94
      %s96 = sphi 0, %s94
      %s97 = sphi 0, %s96
      %s111 = sphi 0, %s97
      %s115 = sphi 0, %s115
      %s117 = sphi 0, %s115
      %s118 = sphi 0, %s117
      %s132 = sphi 0, %s118
      %s136 = sphi 0, %s136
      %s138 = sphi 0, %s136
      %s139 = sphi 0, %s138
      %s153 = sphi 0, %s139
      %s157 = sphi 0, %s157
      %s159 = sphi 0, %s157
      %s160 = sphi 0, %s159
      %s174 = sphi 0, %s160
      %s180 = sphi 0, %s182
      %s183 = sphi 0, %s180
      %s184 = sphi 0, %s183
      %s200 = sphi 0, %s184
      %s206 = sphi 0, %s208
      %s209 = sphi 0, %s206
      %s210 = sphi 0, %s209
      %s226 = sphi 0, %s210
      %s232 = sphi 0, %s234
      %s235 = sphi 0, %s232
      %s236 = sphi 0, %s235
      %s252 = sphi 0, %s236
    $region4: #{fwd.1} parent=1 // loop_header_branch
      %21 = sbr.rel (%p19) target = $region8
    $region5: #{fwd.1} parent=1 // loop_body
      %s23 = ssub.s32 %s18, 1
      %s24 = ssub.s32 %s18, 2
      %s25 = sadd.s32 %s18, 1
      %s26 = ssub.s32 %s18, %s25
      %p27 = scmp.eq.s32.totalorder %s26, 0
      %s29 = sadd.s32 %s28, 1
      %s30 = scalar_select %p27, %s28, %s29
      %p33 = pneg %p27
      %p34 = scmp.eq.s32.totalorder %s18, 1
      %p35 = por %p33, %p34
      %p36 = scmp.ne.s32.totalorder %s28, %s31
      %p37 = scmp.eq.s32.totalorder %s18, 0
      %p38 = por %p36, %p37
      %p39 = scmp.ne.s32.totalorder %s28, %s31
      %p40 = scmp.eq.s32.totalorder %s23, 1
      %p41 = por %p39, %p40
      %p42 = scmp.ne.s32.totalorder %s31, %s32
      %p43 = scmp.eq.s32.totalorder %s23, 0
      %p44 = por %p42, %p43
      %p45 = scmp.ne.s32.totalorder %s31, %s32
      %p46 = scmp.eq.s32.totalorder %s24, 1
      %p47 = por %p45, %p46
      %p49 = scmp.ne.s32.totalorder %s32, %s48
      %p50 = scmp.eq.s32.totalorder %s24, 0
      %p51 = por %p49, %p50
      %s53 = sadd.s32 %s52, 1
      %p56 = scmp.eq.s32.totalorder %s18, 1
      %p57 = scmp.ne.s32.totalorder %s52, %s54
      %p58 = scmp.eq.s32.totalorder %s18, 0
      %p59 = por %p57, %p58
      %p60 = scmp.ne.s32.totalorder %s52, %s54
      %p61 = scmp.eq.s32.totalorder %s23, 1
      %p62 = por %p60, %p61
      %p63 = scmp.ne.s32.totalorder %s54, %s55
      %p64 = scmp.eq.s32.totalorder %s23, 0
      %p65 = por %p63, %p64
      %p66 = scmp.ne.s32.totalorder %s54, %s55
      %p67 = scmp.eq.s32.totalorder %s24, 1
      %p68 = por %p66, %p67
      %p70 = scmp.ne.s32.totalorder %s55, %s69
      %p71 = scmp.eq.s32.totalorder %s24, 0
      %p72 = por %p70, %p71
      %s74 = sadd.s32 %s73, 1
      %p77 = scmp.eq.s32.totalorder %s18, 1
      %p78 = scmp.ne.s32.totalorder %s73, %s75
      %p79 = scmp.eq.s32.totalorder %s18, 0
      %p80 = por %p78, %p79
      %p81 = scmp.ne.s32.totalorder %s73, %s75
      %p82 = scmp.eq.s32.totalorder %s23, 1
      %p83 = por %p81, %p82
      %p84 = scmp.ne.s32.totalorder %s75, %s76
      %p85 = scmp.eq.s32.totalorder %s23, 0
      %p86 = por %p84, %p85
      %p87 = scmp.ne.s32.totalorder %s75, %s76
      %p88 = scmp.eq.s32.totalorder %s24, 1
      %p89 = por %p87, %p88
      %p91 = scmp.ne.s32.totalorder %s76, %s90
      %p92 = scmp.eq.s32.totalorder %s24, 0
      %p93 = por %p91, %p92
      %s95 = sadd.s32 %s94, 1
      %p98 = scmp.eq.s32.totalorder %s18, 1
      %p99 = scmp.ne.s32.totalorder %s94, %s96
      %p100 = scmp.eq.s32.totalorder %s18, 0
      %p101 = por %p99, %p100
      %p102 = scmp.ne.s32.totalorder %s94, %s96
      %p103 = scmp.eq.s32.totalorder %s23, 1
      %p104 = por %p102, %p103
      %p105 = scmp.ne.s32.totalorder %s96, %s97
      %p106 = scmp.eq.s32.totalorder %s23, 0
      %p107 = por %p105, %p106
      %p108 = scmp.ne.s32.totalorder %s96, %s97
      %p109 = scmp.eq.s32.totalorder %s24, 1
      %p110 = por %p108, %p109
      %p112 = scmp.ne.s32.totalorder %s97, %s111
      %p113 = scmp.eq.s32.totalorder %s24, 0
      %p114 = por %p112, %p113
      %s116 = sadd.s32 %s115, 1
      %p119 = scmp.eq.s32.totalorder %s18, 1
      %p120 = scmp.ne.s32.totalorder %s115, %s117
      %p121 = scmp.eq.s32.totalorder %s18, 0
      %p122 = por %p120, %p121
      %p123 = scmp.ne.s32.totalorder %s115, %s117
      %p124 = scmp.eq.s32.totalorder %s23, 1
      %p125 = por %p123, %p124
      %p126 = scmp.ne.s32.totalorder %s117, %s118
      %p127 = scmp.eq.s32.totalorder %s23, 0
      %p128 = por %p126, %p127
      %p129 = scmp.ne.s32.totalorder %s117, %s118
      %p130 = scmp.eq.s32.totalorder %s24, 1
      %p131 = por %p129, %p130
      %p133 = scmp.ne.s32.totalorder %s118, %s132
      %p134 = scmp.eq.s32.totalorder %s24, 0
      %p135 = por %p133, %p134
      %s137 = sadd.s32 %s136, 1
      %p140 = scmp.eq.s32.totalorder %s18, 1
      %p141 = scmp.ne.s32.totalorder %s136, %s138
      %p142 = scmp.eq.s32.totalorder %s18, 0
      %p143 = por %p141, %p142
      %p144 = scmp.ne.s32.totalorder %s136, %s138
      %p145 = scmp.eq.s32.totalorder %s23, 1
      %p146 = por %p144, %p145
      %p147 = scmp.ne.s32.totalorder %s138, %s139
      %p148 = scmp.eq.s32.totalorder %s23, 0
      %p149 = por %p147, %p148
      %p150 = scmp.ne.s32.totalorder %s138, %s139
      %p151 = scmp.eq.s32.totalorder %s24, 1
      %p152 = por %p150, %p151
      %p154 = scmp.ne.s32.totalorder %s139, %s153
      %p155 = scmp.eq.s32.totalorder %s24, 0
      %p156 = por %p154, %p155
      %s158 = sadd.s32 %s157, 1
      %p161 = scmp.eq.s32.totalorder %s18, 1
      %p162 = scmp.ne.s32.totalorder %s157, %s159
      %p163 = scmp.eq.s32.totalorder %s18, 0
      %p164 = por %p162, %p163
      %p165 = scmp.ne.s32.totalorder %s157, %s159
      %p166 = scmp.eq.s32.totalorder %s23, 1
      %p167 = por %p165, %p166
      %p168 = scmp.ne.s32.totalorder %s159, %s160
      %p169 = scmp.eq.s32.totalorder %s23, 0
      %p170 = por %p168, %p169
      %p171 = scmp.ne.s32.totalorder %s159, %s160
      %p172 = scmp.eq.s32.totalorder %s24, 1
      %p173 = por %p171, %p172
      %p175 = scmp.ne.s32.totalorder %s160, %s174
      %p176 = scmp.eq.s32.totalorder %s24, 0
      %p177 = por %p175, %p176
      %s178 = ssub.s32 %s18, %s25
      %p179 = scmp.eq.s32.totalorder %s178, 0
      %s181 = sadd.s32 %s180, 1
      %s182 = scalar_select %p179, %s180, %s181
      %p185 = pneg %p179
      %p186 = scmp.eq.s32.totalorder %s18, 1
      %p187 = por %p185, %p186
      %p188 = scmp.ne.s32.totalorder %s180, %s183
      %p189 = scmp.eq.s32.totalorder %s18, 0
      %p190 = por %p188, %p189
      %p191 = scmp.ne.s32.totalorder %s180, %s183
      %p192 = scmp.eq.s32.totalorder %s23, 1
      %p193 = por %p191, %p192
      %p194 = scmp.ne.s32.totalorder %s183, %s184
      %p195 = scmp.eq.s32.totalorder %s23, 0
      %p196 = por %p194, %p195
      %p197 = scmp.ne.s32.totalorder %s183, %s184
      %p198 = scmp.eq.s32.totalorder %s24, 1
      %p199 = por %p197, %p198
      %p201 = scmp.ne.s32.totalorder %s184, %s200
      %p202 = scmp.eq.s32.totalorder %s24, 0
      %p203 = por %p201, %p202
      %s204 = ssub.s32 %s18, %s25
      %p205 = scmp.eq.s32.totalorder %s204, 0
      %s207 = sadd.s32 %s206, 1
      %s208 = scalar_select %p205, %s206, %s207
      %p211 = pneg %p205
      %p212 = scmp.eq.s32.totalorder %s18, 1
      %p213 = por %p211, %p212
      %p214 = scmp.ne.s32.totalorder %s206, %s209
      %p215 = scmp.eq.s32.totalorder %s18, 0
      %p216 = por %p214, %p215
      %p217 = scmp.ne.s32.totalorder %s206, %s209
      %p218 = scmp.eq.s32.totalorder %s23, 1
      %p219 = por %p217, %p218
      %p220 = scmp.ne.s32.totalorder %s209, %s210
      %p221 = scmp.eq.s32.totalorder %s23, 0
      %p222 = por %p220, %p221
      %p223 = scmp.ne.s32.totalorder %s209, %s210
      %p224 = scmp.eq.s32.totalorder %s24, 1
      %p225 = por %p223, %p224
      %p227 = scmp.ne.s32.totalorder %s210, %s226
      %p228 = scmp.eq.s32.totalorder %s24, 0
      %p229 = por %p227, %p228
      %s230 = ssub.s32 %s18, %s25
      %p231 = scmp.eq.s32.totalorder %s230, 0
      %s233 = sadd.s32 %s232, 1
      %s234 = scalar_select %p231, %s232, %s233
      %p237 = pneg %p231
      %p238 = scmp.eq.s32.totalorder %s18, 1
      %p239 = por %p237, %p238
      %p240 = scmp.ne.s32.totalorder %s232, %s235
      %p241 = scmp.eq.s32.totalorder %s18, 0
      %p242 = por %p240, %p241
      %p243 = scmp.ne.s32.totalorder %s232, %s235
      %p244 = scmp.eq.s32.totalorder %s23, 1
      %p245 = por %p243, %p244
      %p246 = scmp.ne.s32.totalorder %s235, %s236
      %p247 = scmp.eq.s32.totalorder %s23, 0
      %p248 = por %p246, %p247
      %p249 = scmp.ne.s32.totalorder %s235, %s236
      %p250 = scmp.eq.s32.totalorder %s24, 1
      %p251 = por %p249, %p250
      %p253 = scmp.ne.s32.totalorder %s236, %s252
      %p254 = scmp.eq.s32.totalorder %s24, 0
      %p255 = por %p253, %p254
      %p256 = scmp.le.s32.totalorder 1, %s18
      %p257 = scmp.lt.s32.totalorder %s18, 3
      %p258 = pnand %p256, %p257
      %p259 = pneg %p258
      // Predicated region
      $region9: #{fwd.1} parent=5 // pred_check
        _
      $region10: #{fwd.1} parent=5 // pred_check_branch
        %261 = sbr.rel (%p258) target = $region12
      $region11: #{fwd.1} parent=5 // pred_region
        %s262 = ssub.s32 %s18, 1
        // Predicated region
        $region13: #{fwd.1} parent=11 // pred_check
          %p263 = pneg %p65
        $region14: #{fwd.1} parent=11 // pred_check_branch
          %265 = sbr.rel (%p263) target = $region16
        $region15: #{fwd.1} parent=11 // pred_region
          %s267 = ssub.s32 3456, 3456
          %268 = vsyncadd [#allocation6], %s267
          %s269 = sshll.u32 [#allocation5], 4
          %s270 = int_to_ptr.vmem [resolvable:$true] %s269
          %275 = dma.hbm_to_vmem [thread:$0]  %s1, 3456, %s270, [#allocation6], 128, 128, 8
        $region16: #{fwd.1} parent=11 // pred_fallthru
          _
        // Predicated region
        $region17: #{fwd.1} parent=11 // pred_check
          %p276 = pneg %p86
        $region18: #{fwd.1} parent=11 // pred_check_branch
          %278 = sbr.rel (%p276) target = $region20
        $region19: #{fwd.1} parent=11 // pred_region
          _
        $region20: #{fwd.1} parent=11 // pred_fallthru
          _
        // Predicated region
        $region21: #{fwd.1} parent=11 // pred_check
          %p279 = pneg %p107
        $region22: #{fwd.1} parent=11 // pred_check_branch
          %281 = sbr.rel (%p279) target = $region24
        $region23: #{fwd.1} parent=11 // pred_region
          %s283 = ssub.s32 3840, 3840
          %284 = vsyncadd [#allocation8], %s283
          %s285 = sshll.u32 [#allocation7], 4
          %s286 = int_to_ptr.vmem [resolvable:$true] %s285
          %291 = dma.hbm_to_vmem [thread:$0]  %s3, 3840, %s286, [#allocation8], 128, 128, 8
        $region24: #{fwd.1} parent=11 // pred_fallthru
          _
        // Predicated region
        $region25: #{fwd.1} parent=11 // pred_check
          %p292 = pneg %p128
        $region26: #{fwd.1} parent=11 // pred_check_branch
          %294 = sbr.rel (%p292) target = $region28
        $region27: #{fwd.1} parent=11 // pred_region
          _
        $region28: #{fwd.1} parent=11 // pred_fallthru
          _
        // Predicated region
        $region29: #{fwd.1} parent=11 // pred_check
          %p295 = pneg %p149
        $region30: #{fwd.1} parent=11 // pred_check_branch
          %297 = sbr.rel (%p295) target = $region32
        $region31: #{fwd.1} parent=11 // pred_region
          _
        $region32: #{fwd.1} parent=11 // pred_fallthru
          _
        // Predicated region
        $region33: #{fwd.1} parent=11 // pred_check
          %p298 = pneg %p170
        $region34: #{fwd.1} parent=11 // pred_check_branch
          %300 = sbr.rel (%p298) target = $region36
        $region35: #{fwd.1} parent=11 // pred_region
          _
        $region36: #{fwd.1} parent=11 // pred_fallthru
          _
      $region12: #{fwd.1} parent=5 // pred_fallthru
        _
      %p301 = scmp.lt.s32.totalorder %s18, 2
      // Predicated region
      $region37: #{fwd.1} parent=5 // pred_check
        %p302 = pneg %p301
      $region38: #{fwd.1} parent=5 // pred_check_branch
        %304 = sbr.rel (%p302) target = $region40
      $region39: #{fwd.1} parent=5 // pred_region
        // Predicated region
        $region41: #{fwd.1} parent=39 // pred_check
          %p305 = pneg %p38
        $region42: #{fwd.1} parent=39 // pred_check_branch
          %307 = sbr.rel (%p305) target = $region44
        $region43: #{fwd.1} parent=39 // pred_region
          %p308 = scmp.lt.s32.totalorder %s18, 1
          %s309 = scalar_select %p308, %s18, 1
          %s310 = smul.addr %s309, 2
          %s311 = smul.addr %s310, 8
          %s312 = scalar_lea.vmem %s0, %s311
        $region44: #{fwd.1} parent=39 // pred_fallthru
          _
      $region40: #{fwd.1} parent=5 // pred_fallthru
        _
      %p313 = scmp.le.s32.totalorder 1, %s18
      %p314 = scmp.lt.s32.totalorder %s18, 3
      %p315 = pnand %p313, %p314
      %p316 = pneg %p315
      // Predicated region
      $region45: #{fwd.1} parent=5 // pred_check
        _
      $region46: #{fwd.1} parent=5 // pred_check_branch
        %318 = sbr.rel (%p315) target = $region48
      $region47: #{fwd.1} parent=5 // pred_region
        %s319 = ssub.s32 %s18, 1
        // Predicated region
        $region49: #{fwd.1} parent=47 // pred_check
          %p320 = pneg %p65
        $region50: #{fwd.1} parent=47 // pred_check_branch
          %322 = sbr.rel (%p320) target = $region52
        $region51: #{fwd.1} parent=47 // pred_region
          %323 = dma.done [#allocation6], 3456
        $region52: #{fwd.1} parent=47 // pred_fallthru
          _
        // Predicated region
        $region53: #{fwd.1} parent=47 // pred_check
          %p324 = pneg %p107
        $region54: #{fwd.1} parent=47 // pred_check_branch
          %326 = sbr.rel (%p324) target = $region56
        $region55: #{fwd.1} parent=47 // pred_region
          %327 = dma.done [#allocation8], 3840
        $region56: #{fwd.1} parent=47 // pred_fallthru
          _
        %p328 = scmp.lt.s32.totalorder %s23, 1
        %s329 = scalar_select %p328, %s23, 1
        %s330 = smul.addr %s329, 2
        %s331 = smul.addr %s330, 8
        %s332 = scalar_lea.vmem %s0, %s331
        %p333 = pneg %p44
        %p334 = pneg %p41
        %p335 = pneg %p65
        %p336 = pneg %p62
        %p337 = pneg %p86
        %p338 = pneg %p83
        %p339 = pneg %p107
        %p340 = pneg %p104
        %p341 = pneg %p128
        %p342 = pneg %p125
        %p343 = pneg %p149
        %p344 = pneg %p146
        %p345 = pneg %p170
        %p346 = pneg %p167
        %p347 = pneg %p196
        %p348 = pneg %p193
        %p349 = scmp.lt.s32.totalorder %s23, 1
        %s350 = scalar_select %p349, %s23, 1
        %s351 = smul.addr %s350, 2
        %s352 = smul.addr %s351, 8
        %s353 = scalar_lea.vmem %s7, %s352
        %p354 = pneg %p222
        %p355 = pneg %p219
        %p356 = scmp.lt.s32.totalorder %s23, 1
        %s357 = scalar_select %p356, %s23, 1
        %s358 = smul.addr %s357, 8
        %s359 = scalar_lea.vmem %s8, %s358
        %p360 = pneg %p248
        %p361 = pneg %p245
        %p362 = scmp.lt.s32.totalorder %s23, 1
        %s363 = scalar_select %p362, %s23, 1
        %s364 = smul.addr %s363, 4
        %s365 = scalar_lea.vmem %s9, %s364
        %p366 = scmp.lt.s32.totalorder %s23, 1
        %s367 = scalar_select %p366, %s23, 1
        %s368 = smul.addr %s367, 2
        %s369 = smul.addr %s368, 8
        %s370 = scalar_lea.vmem %s0, %s369
        %p371 = scmp.lt.s32.totalorder %s23, 1
        %s372 = scalar_select %p371, %s23, 1
        %s373 = smul.addr %s372, 2
        %s374 = smul.addr %s373, 8
        %s375 = scalar_lea.vmem %s7, %s374
        %p376 = scmp.lt.s32.totalorder %s23, 1
        %s377 = scalar_select %p376, %s23, 1
        %s378 = smul.addr %s377, 8
        %s379 = scalar_lea.vmem %s8, %s378
        %p380 = scmp.lt.s32.totalorder %s23, 1
        %s381 = scalar_select %p380, %s23, 1
        %s382 = smul.addr %s381, 4
        %s383 = scalar_lea.vmem %s9, %s382
        %vm384 = vcmask 588800
        %385 = vst.msk [vmem:[#allocation2] sm:$0xff] %vm384, 0.0
        %386 = vst.msk [vmem:[#allocation2 + $0x8] sm:$0xff] %vm384, 0.0
        %vm387 = vcmask 582656
        %388 = vst.msk [vmem:[#allocation2 + $0x10] sm:$0x3] %vm387, 0.0
        %v389 = vld [vmem:[%s370] sm:$0xff]
        %v390 = vld [vmem:[%s370 + $0x8] sm:$0xff]
        %393 = vrot.lane.b32.xlu0 %v389, 4
        %v394 = vpop.permute.xlu0 %393
        %395 = vrot.lane.b32.xlu0 %v390, 4
        %v396 = vpop.permute.xlu0 %395
        %vm399 = vcmask 556064
        %400 = vst.msk [vmem:[#allocation2 + $0x1] sm:$0xff] %vm399, %v394
        %401 = vst.msk [vmem:[#allocation2 + $0x9] sm:$0xff] %vm399, %v396
        %v402 = vld [vmem:[#allocation2] sm:$0xff]
        %v403 = vld [vmem:[#allocation2 + $0x8] sm:$0xff]
        %v404 = vld [vmem:[#allocation5] sm:$0xff]
        %v405 = vld [vmem:[#allocation5 + $0x8] sm:$0xff]
        %v406 = vld [vmem:[#allocation5 + $0x10] sm:$0xff]
        %v407 = vld [vmem:[#allocation5 + $0x18] sm:$0xff]
        %v408 = vld [vmem:[#allocation5 + $0x20] sm:$0xff]
        %v409 = vld [vmem:[#allocation5 + $0x28] sm:$0xff]
        %v410 = vld [vmem:[#allocation5 + $0x30] sm:$0xff]
        %v411 = vld [vmem:[#allocation5 + $0x38] sm:$0xff]
        %v412 = vld [vmem:[#allocation5 + $0x40] sm:$0xff]
        %v413 = vld [vmem:[#allocation2 + $0x1] sm:$0xff]
        %v414 = vld [vmem:[#allocation2 + $0x9] sm:$0xff]
        %s415 = scalar_lea.vmem [#allocation5], 72
        %v416 = vld [vmem:[%s415] sm:$0xff]
        %v417 = vld [vmem:[%s415 + $0x8] sm:$0xff]
        %v418 = vld [vmem:[%s415 + $0x10] sm:$0xff]
        %v419 = vld [vmem:[%s415 + $0x18] sm:$0xff]
        %v420 = vld [vmem:[%s415 + $0x20] sm:$0xff]
        %v421 = vld [vmem:[%s415 + $0x28] sm:$0xff]
        %v422 = vld [vmem:[%s415 + $0x30] sm:$0xff]
        %v423 = vld [vmem:[%s415 + $0x38] sm:$0xff]
        %v424 = vld [vmem:[%s415 + $0x40] sm:$0xff]
        %v426 = vsel %vm384, %v413, 0
        %v429 = vsel %vm384, %v414, 0
        %431 = vmatprep.subr.mxu0 0.0
        %432 = vmatpush1.msra.mxu0 0.0
        %433 = vmatprep.subr.mxu0 0.0
        %434 = vmatpush1.msra.mxu0 0.0
        %435 = vmatprep.subr.mxu0 0.0
        %436 = vmatpush1.msra.mxu0 0.0
        %437 = vmatprep.subr.mxu0 0.0
        %438 = vmatpush1.msra.mxu0 0.0
        %439 = vmatprep.subr.mxu0 0.0
        %440 = vmatpush1.msra.mxu0 0.0
        %441 = vmatprep.subr.mxu0 0.0
        %442 = vmatpush1.msra.mxu0 0.0
        %443 = vmatprep.subr.mxu0 0.0
        %444 = vmatpush1.msra.mxu0 0.0
        %445 = vmatprep.subr.mxu0 0.0
        %446 = vmatpush1.msra.mxu0 %v424
        %447 = vmatprep.subr.mxu0 0.0
        %448 = vmatpush1.msra.mxu0 %v423
        %449 = vmatprep.subr.mxu0 0.0
        %450 = vmatpush1.msra.mxu0 %v422
        %451 = vmatprep.subr.mxu0 0.0
        %452 = vmatpush1.msra.mxu0 %v421
        %453 = vmatprep.subr.mxu0 0.0
        %454 = vmatpush1.msra.mxu0 %v420
        %455 = vmatprep.subr.mxu0 0.0
        %456 = vmatpush1.msra.mxu0 %v419
        %457 = vmatprep.subr.mxu0 0.0
        %458 = vmatpush1.msra.mxu0 %v418
        %459 = vmatprep.subr.mxu0 0.0
        %460 = vmatpush1.msra.mxu0 %v417
        %461 = vmatprep.subr.mxu0 0.0
        %462 = vmatpush1.msra.mxu0 %v416
        %463 = vmatprep.subr.mxu0 0.0
        %464 = vmatpush2.msra.mxu0 0.0
        %465 = vmatprep.subr.mxu0 0.0
        %466 = vmatpush2.msra.mxu0 0.0
        %467 = vmatprep.subr.mxu0 0.0
        %468 = vmatpush2.msra.mxu0 0.0
        %469 = vmatprep.subr.mxu0 0.0
        %470 = vmatpush2.msra.mxu0 0.0
        %471 = vmatprep.subr.mxu0 0.0
        %472 = vmatpush2.msra.mxu0 0.0
        %473 = vmatprep.subr.mxu0 0.0
        %474 = vmatpush2.msra.mxu0 0.0
        %475 = vmatprep.subr.mxu0 0.0
        %476 = vmatpush2.msra.mxu0 0.0
        %477 = vmatprep.subr.mxu0 0.0
        %478 = vmatpush2.msra.mxu0 0.0
        %479 = vmatprep.subr.mxu0 0.0
        %480 = vmatpush2.msra.mxu0 0.0
        %481 = vmatprep.subr.mxu0 0.0
        %482 = vmatpush2.msra.mxu0 0.0
        %483 = vmatprep.subr.mxu0 0.0
        %484 = vmatpush2.msra.mxu0 0.0
        %485 = vmatprep.subr.mxu0 0.0
        %486 = vmatpush2.msra.mxu0 0.0
        %487 = vmatprep.subr.mxu0 0.0
        %488 = vmatpush2.msra.mxu0 0.0
        %489 = vmatprep.subr.mxu0 0.0
        %490 = vmatpush2.msra.mxu0 0.0
        %491 = vmatprep.subr.mxu0 0.0
        %492 = vmatpush2.msra.mxu0 0.0
        %493 = vmatprep.subr.mxu0 0.0
        %494 = vmatpush2.msra.mxu0 0.0
        %495 = vmatprep.mubr.f32.mxu0 0.0
        %496 = vmatmul.mubr.f32.gmra.mxu0 %v426
        %v497 = vpop.f32.mrf.mxu0
        %v498 = vadd.f32 0.0, %v497
        %v499 = vpop.f32.mrf.mxu0
        %500 = vmatprep.mubr.f32.mxu0 0.0
        %501 = vmatmul.mubr.f32.gmra.mxu0 %v429
        %v502 = vpop.f32.mrf.mxu0
        %v503 = vadd.f32 0.0, %v502
        %v504 = vpop.f32.mrf.mxu0
        %505 = vdwg.mxu0
        %v507 = vsel %vm384, %v402, 0
        %v510 = vsel %vm384, %v403, 0
        %512 = vmatprep.subr.mxu0 0.0
        %513 = vmatpush1.msra.mxu0 0.0
        %514 = vmatprep.subr.mxu0 0.0
        %515 = vmatpush1.msra.mxu0 0.0
        %516 = vmatprep.subr.mxu0 0.0
        %517 = vmatpush1.msra.mxu0 0.0
        %518 = vmatprep.subr.mxu0 0.0
        %519 = vmatpush1.msra.mxu0 0.0
        %520 = vmatprep.subr.mxu0 0.0
        %521 = vmatpush1.msra.mxu0 0.0
        %522 = vmatprep.subr.mxu0 0.0
        %523 = vmatpush1.msra.mxu0 0.0
        %524 = vmatprep.subr.mxu0 0.0
        %525 = vmatpush1.msra.mxu0 0.0
        %526 = vmatprep.subr.mxu0 0.0
        %527 = vmatpush1.msra.mxu0 %v412
        %528 = vmatprep.subr.mxu0 0.0
        %529 = vmatpush1.msra.mxu0 %v411
        %530 = vmatprep.subr.mxu0 0.0
        %531 = vmatpush1.msra.mxu0 %v410
        %532 = vmatprep.subr.mxu0 0.0
        %533 = vmatpush1.msra.mxu0 %v409
        %534 = vmatprep.subr.mxu0 0.0
        %535 = vmatpush1.msra.mxu0 %v408
        %536 = vmatprep.subr.mxu0 0.0
        %537 = vmatpush1.msra.mxu0 %v407
        %538 = vmatprep.subr.mxu0 0.0
        %539 = vmatpush1.msra.mxu0 %v406
        %540 = vmatprep.subr.mxu0 0.0
        %541 = vmatpush1.msra.mxu0 %v405
        %542 = vmatprep.subr.mxu0 0.0
        %543 = vmatpush1.msra.mxu0 %v404
        %544 = vmatprep.subr.mxu0 0.0
        %545 = vmatpush2.msra.mxu0 0.0
        %546 = vmatprep.subr.mxu0 0.0
        %547 = vmatpush2.msra.mxu0 0.0
        %548 = vmatprep.subr.mxu0 0.0
        %549 = vmatpush2.msra.mxu0 0.0
        %550 = vmatprep.subr.mxu0 0.0
        %551 = vmatpush2.msra.mxu0 0.0
        %552 = vmatprep.subr.mxu0 0.0
        %553 = vmatpush2.msra.mxu0 0.0
        %554 = vmatprep.subr.mxu0 0.0
        %555 = vmatpush2.msra.mxu0 0.0
        %556 = vmatprep.subr.mxu0 0.0
        %557 = vmatpush2.msra.mxu0 0.0
        %558 = vmatprep.subr.mxu0 0.0
        %559 = vmatpush2.msra.mxu0 0.0
        %560 = vmatprep.subr.mxu0 0.0
        %561 = vmatpush2.msra.mxu0 0.0
        %562 = vmatprep.subr.mxu0 0.0
        %563 = vmatpush2.msra.mxu0 0.0
        %564 = vmatprep.subr.mxu0 0.0
        %565 = vmatpush2.msra.mxu0 0.0
        %566 = vmatprep.subr.mxu0 0.0
        %567 = vmatpush2.msra.mxu0 0.0
        %568 = vmatprep.subr.mxu0 0.0
        %569 = vmatpush2.msra.mxu0 0.0
        %570 = vmatprep.subr.mxu0 0.0
        %571 = vmatpush2.msra.mxu0 0.0
        %572 = vmatprep.subr.mxu0 0.0
        %573 = vmatpush2.msra.mxu0 0.0
        %574 = vmatprep.subr.mxu0 0.0
        %575 = vmatpush2.msra.mxu0 0.0
        %576 = vmatprep.mubr.f32.mxu0 0.0
        %577 = vmatmul.mubr.f32.gmra.mxu0 %v507
        %v578 = vpop.f32.mrf.mxu0
        %v579 = vadd.f32 %v498, %v578
        %v580 = vpop.f32.mrf.mxu0
        %581 = vmatprep.mubr.f32.mxu0 0.0
        %582 = vmatmul.mubr.f32.gmra.mxu0 %v510
        %v583 = vpop.f32.mrf.mxu0
        %v584 = vadd.f32 %v503, %v583
        %v585 = vpop.f32.mrf.mxu0
        %586 = vdwg.mxu0
        %v587 = vld [vmem:[#allocation2 + $0x2] sm:$0xff]
        %v588 = vld [vmem:[#allocation2 + $0xa] sm:$0xff]
        %s589 = scalar_lea.vmem [#allocation5], 144
        %v590 = vld [vmem:[%s589] sm:$0xff]
        %v591 = vld [vmem:[%s589 + $0x8] sm:$0xff]
        %v592 = vld [vmem:[%s589 + $0x10] sm:$0xff]
        %v593 = vld [vmem:[%s589 + $0x18] sm:$0xff]
        %v594 = vld [vmem:[%s589 + $0x20] sm:$0xff]
        %v595 = vld [vmem:[%s589 + $0x28] sm:$0xff]
        %v596 = vld [vmem:[%s589 + $0x30] sm:$0xff]
        %v597 = vld [vmem:[%s589 + $0x38] sm:$0xff]
        %v598 = vld [vmem:[%s589 + $0x40] sm:$0xff]
        %v600 = vsel %vm384, %v587, 0
        %v603 = vsel %vm384, %v588, 0
        %605 = vmatprep.subr.mxu0 0.0
        %606 = vmatpush1.msra.mxu0 0.0
        %607 = vmatprep.subr.mxu0 0.0
        %608 = vmatpush1.msra.mxu0 0.0
        %609 = vmatprep.subr.mxu0 0.0
        %610 = vmatpush1.msra.mxu0 0.0
        %611 = vmatprep.subr.mxu0 0.0
        %612 = vmatpush1.msra.mxu0 0.0
        %613 = vmatprep.subr.mxu0 0.0
        %614 = vmatpush1.msra.mxu0 0.0
        %615 = vmatprep.subr.mxu0 0.0
        %616 = vmatpush1.msra.mxu0 0.0
        %617 = vmatprep.subr.mxu0 0.0
        %618 = vmatpush1.msra.mxu0 0.0
        %619 = vmatprep.subr.mxu0 0.0
        %620 = vmatpush1.msra.mxu0 %v598
        %621 = vmatprep.subr.mxu0 0.0
        %622 = vmatpush1.msra.mxu0 %v597
        %623 = vmatprep.subr.mxu0 0.0
        %624 = vmatpush1.msra.mxu0 %v596
        %625 = vmatprep.subr.mxu0 0.0
        %626 = vmatpush1.msra.mxu0 %v595
        %627 = vmatprep.subr.mxu0 0.0
        %628 = vmatpush1.msra.mxu0 %v594
        %629 = vmatprep.subr.mxu0 0.0
        %630 = vmatpush1.msra.mxu0 %v593
        %631 = vmatprep.subr.mxu0 0.0
        %632 = vmatpush1.msra.mxu0 %v592
        %633 = vmatprep.subr.mxu0 0.0
        %634 = vmatpush1.msra.mxu0 %v591
        %635 = vmatprep.subr.mxu0 0.0
        %636 = vmatpush1.msra.mxu0 %v590
        %637 = vmatprep.subr.mxu0 0.0
        %638 = vmatpush2.msra.mxu0 0.0
        %639 = vmatprep.subr.mxu0 0.0
        %640 = vmatpush2.msra.mxu0 0.0
        %641 = vmatprep.subr.mxu0 0.0
        %642 = vmatpush2.msra.mxu0 0.0
        %643 = vmatprep.subr.mxu0 0.0
        %644 = vmatpush2.msra.mxu0 0.0
        %645 = vmatprep.subr.mxu0 0.0
        %646 = vmatpush2.msra.mxu0 0.0
        %647 = vmatprep.subr.mxu0 0.0
        %648 = vmatpush2.msra.mxu0 0.0
        %649 = vmatprep.subr.mxu0 0.0
        %650 = vmatpush2.msra.mxu0 0.0
        %651 = vmatprep.subr.mxu0 0.0
        %652 = vmatpush2.msra.mxu0 0.0
        %653 = vmatprep.subr.mxu0 0.0
        %654 = vmatpush2.msra.mxu0 0.0
        %655 = vmatprep.subr.mxu0 0.0
        %656 = vmatpush2.msra.mxu0 0.0
        %657 = vmatprep.subr.mxu0 0.0
        %658 = vmatpush2.msra.mxu0 0.0
        %659 = vmatprep.subr.mxu0 0.0
        %660 = vmatpush2.msra.mxu0 0.0
        %661 = vmatprep.subr.mxu0 0.0
        %662 = vmatpush2.msra.mxu0 0.0
        %663 = vmatprep.subr.mxu0 0.0
        %664 = vmatpush2.msra.mxu0 0.0
        %665 = vmatprep.subr.mxu0 0.0
        %666 = vmatpush2.msra.mxu0 0.0
        %667 = vmatprep.subr.mxu0 0.0
        %668 = vmatpush2.msra.mxu0 0.0
        %669 = vmatprep.mubr.f32.mxu0 0.0
        %670 = vmatmul.mubr.f32.gmra.mxu0 %v600
        %v671 = vpop.f32.mrf.mxu0
        %v672 = vadd.f32 0.0, %v671
        %v673 = vpop.f32.mrf.mxu0
        %674 = vmatprep.mubr.f32.mxu0 0.0
        %675 = vmatmul.mubr.f32.gmra.mxu0 %v603
        %v676 = vpop.f32.mrf.mxu0
        %v677 = vadd.f32 0.0, %v676
        %v678 = vpop.f32.mrf.mxu0
        %679 = vdwg.mxu0
        %v680 = vadd.f32 %v579, %v672
        %v681 = vadd.f32 %v584, %v677
        %v682 = vld [vmem:[%s2] sm:$0x1]
        %v684 = vlaneseq
        %v685 = vshrl.u32 %v684, 7
        %v686 = vsub.s32 0, %v685
        %v687 = vrot.slane %v682, %v686
        %v689 = vadd.f32 %v680, %v687
        %v690 = vadd.f32 %v681, %v687
        %v691 = vmax.f32 %v689, 0.0
        %v692 = vmax.f32 %v690, 0.0
        %693 = vst [vmem:[%s375] sm:$0xff] %v691
        %694 = vst [vmem:[%s375 + $0x8] sm:$0xff] %v692
        %vm695 = vcmask 654336
        %696 = vst.msk [vmem:[#allocation3] sm:$0xff] %vm695, 0.0
        %vm697 = vcmask 648192
        %698 = vst.msk [vmem:[#allocation3 + $0x8] sm:$0x3] %vm697, 0.0
        %v699 = vld [vmem:[%s375] ss:$2 sm:$0xff]
        %s700 = scalar_lea.vmem %s375, 1
        %v701 = vld [vmem:[%s700] ss:$2 sm:$0xff]
        %v702 = vmax.f32 %v699, %v701
        %704 = vrot.lane.b32.xlu0 %v702, 120
        %v705 = vpop.permute.xlu0 %704
        %v707 = vmax.f32 %v702, %v705
        %709 = vrot.lane.b32.xlu0 %v707, 8
        %v710 = vpop.permute.xlu0 %709
        %vm712 = vcmask 130112
        %713 = vst.msk [vmem:[#allocation3 + $0x1] sm:$0xff] %vm712, %v710
        %vm714 = vcmask 195712
        %715 = vst.msk [vmem:[#allocation3 + $0x1] sm:$0xff] %vm714, %v707
        %716 = vrot.lane.b32.xlu0 %v707, 120
        %v717 = vpop.permute.xlu0 %716
        %vm719 = vcmask 261312
        %720 = vst.msk [vmem:[#allocation3 + $0x1] sm:$0xff] %vm719, %v717
        %721 = vrot.lane.b32.xlu0 %v707, 112
        %v722 = vpop.permute.xlu0 %721
        %vm724 = vcmask 326912
        %725 = vst.msk [vmem:[#allocation3 + $0x1] sm:$0xff] %vm724, %v722
        %726 = vrot.lane.b32.xlu0 %v707, 104
        %v727 = vpop.permute.xlu0 %726
        %vm729 = vcmask 392512
        %730 = vst.msk [vmem:[#allocation3 + $0x1] sm:$0xff] %vm729, %v727
        %731 = vrot.lane.b32.xlu0 %v707, 96
        %v732 = vpop.permute.xlu0 %731
        %vm734 = vcmask 458112
        %735 = vst.msk [vmem:[#allocation3 + $0x1] sm:$0xff] %vm734, %v732
        %736 = vrot.lane.b32.xlu0 %v707, 88
        %v737 = vpop.permute.xlu0 %736
        %vm739 = vcmask 523712
        %740 = vst.msk [vmem:[#allocation3 + $0x1] sm:$0xff] %vm739, %v737
        %741 = vrot.lane.b32.xlu0 %v707, 80
        %v742 = vpop.permute.xlu0 %741
        %vm744 = vcmask 589312
        %745 = vst.msk [vmem:[#allocation3 + $0x1] sm:$0xff] %vm744, %v742
        %v746 = vld [vmem:[#allocation3] sm:$0xff]
        %v747 = vld [vmem:[#allocation7] sm:$0xff]
        %v748 = vld [vmem:[#allocation7 + $0x8] sm:$0xff]
        %v749 = vld [vmem:[#allocation7 + $0x10] sm:$0xff]
        %v750 = vld [vmem:[#allocation7 + $0x18] sm:$0xff]
        %v751 = vld [vmem:[#allocation7 + $0x20] sm:$0xff]
        %v752 = vld [vmem:[#allocation7 + $0x28] sm:$0xff]
        %v753 = vld [vmem:[#allocation7 + $0x30] sm:$0xff]
        %v754 = vld [vmem:[#allocation7 + $0x38] sm:$0xff]
        %v755 = vld [vmem:[#allocation7 + $0x40] sm:$0xff]
        %v756 = vld [vmem:[#allocation7 + $0x48] sm:$0xff]
        %v757 = vld [vmem:[#allocation3 + $0x1] sm:$0xff]
        %s758 = scalar_lea.vmem [#allocation7], 80
        %v759 = vld [vmem:[%s758] sm:$0xff]
        %v760 = vld [vmem:[%s758 + $0x8] sm:$0xff]
        %v761 = vld [vmem:[%s758 + $0x10] sm:$0xff]
        %v762 = vld [vmem:[%s758 + $0x18] sm:$0xff]
        %v763 = vld [vmem:[%s758 + $0x20] sm:$0xff]
        %v764 = vld [vmem:[%s758 + $0x28] sm:$0xff]
        %v765 = vld [vmem:[%s758 + $0x30] sm:$0xff]
        %v766 = vld [vmem:[%s758 + $0x38] sm:$0xff]
        %v767 = vld [vmem:[%s758 + $0x40] sm:$0xff]
        %v768 = vld [vmem:[%s758 + $0x48] sm:$0xff]
        %v770 = vsel %vm695, %v757, 0
        %772 = vmatprep.subr.mxu0 0.0
        %773 = vmatpush1.msra.mxu0 0.0
        %774 = vmatprep.subr.mxu0 0.0
        %775 = vmatpush1.msra.mxu0 0.0
        %776 = vmatprep.subr.mxu0 0.0
        %777 = vmatpush1.msra.mxu0 0.0
        %778 = vmatprep.subr.mxu0 0.0
        %779 = vmatpush1.msra.mxu0 0.0
        %780 = vmatprep.subr.mxu0 0.0
        %781 = vmatpush1.msra.mxu0 0.0
        %782 = vmatprep.subr.mxu0 0.0
        %783 = vmatpush1.msra.mxu0 0.0
        %784 = vmatprep.subr.mxu0 0.0
        %785 = vmatpush1.msra.mxu0 %v768
        %786 = vmatprep.subr.mxu0 0.0
        %787 = vmatpush1.msra.mxu0 %v767
        %788 = vmatprep.subr.mxu0 0.0
        %789 = vmatpush1.msra.mxu0 %v766
        %790 = vmatprep.subr.mxu0 0.0
        %791 = vmatpush1.msra.mxu0 %v765
        %792 = vmatprep.subr.mxu0 0.0
        %793 = vmatpush1.msra.mxu0 %v764
        %794 = vmatprep.subr.mxu0 0.0
        %795 = vmatpush1.msra.mxu0 %v763
        %796 = vmatprep.subr.mxu0 0.0
        %797 = vmatpush1.msra.mxu0 %v762
        %798 = vmatprep.subr.mxu0 0.0
        %799 = vmatpush1.msra.mxu0 %v761
        %800 = vmatprep.subr.mxu0 0.0
        %801 = vmatpush1.msra.mxu0 %v760
        %802 = vmatprep.subr.mxu0 0.0
        %803 = vmatpush1.msra.mxu0 %v759
        %804 = vmatprep.subr.mxu0 0.0
        %805 = vmatpush2.msra.mxu0 0.0
        %806 = vmatprep.subr.mxu0 0.0
        %807 = vmatpush2.msra.mxu0 0.0
        %808 = vmatprep.subr.mxu0 0.0
        %809 = vmatpush2.msra.mxu0 0.0
        %810 = vmatprep.subr.mxu0 0.0
        %811 = vmatpush2.msra.mxu0 0.0
        %812 = vmatprep.subr.mxu0 0.0
        %813 = vmatpush2.msra.mxu0 0.0
        %814 = vmatprep.subr.mxu0 0.0
        %815 = vmatpush2.msra.mxu0 0.0
        %816 = vmatprep.subr.mxu0 0.0
        %817 = vmatpush2.msra.mxu0 0.0
        %818 = vmatprep.subr.mxu0 0.0
        %819 = vmatpush2.msra.mxu0 0.0
        %820 = vmatprep.subr.mxu0 0.0
        %821 = vmatpush2.msra.mxu0 0.0
        %822 = vmatprep.subr.mxu0 0.0
        %823 = vmatpush2.msra.mxu0 0.0
        %824 = vmatprep.subr.mxu0 0.0
        %825 = vmatpush2.msra.mxu0 0.0
        %826 = vmatprep.subr.mxu0 0.0
        %827 = vmatpush2.msra.mxu0 0.0
        %828 = vmatprep.subr.mxu0 0.0
        %829 = vmatpush2.msra.mxu0 0.0
        %830 = vmatprep.subr.mxu0 0.0
        %831 = vmatpush2.msra.mxu0 0.0
        %832 = vmatprep.subr.mxu0 0.0
        %833 = vmatpush2.msra.mxu0 0.0
        %834 = vmatprep.subr.mxu0 0.0
        %835 = vmatpush2.msra.mxu0 0.0
        %836 = vmatprep.mubr.f32.mxu0 0.0
        %837 = vmatmul.mubr.f32.gmra.mxu0 %v770
        %v838 = vpop.f32.mrf.mxu0
        %v839 = vadd.f32 0.0, %v838
        %v840 = vpop.f32.mrf.mxu0
        %841 = vdwg.mxu0
        %v843 = vsel %vm695, %v746, 0
        %845 = vmatprep.subr.mxu0 0.0
        %846 = vmatpush1.msra.mxu0 0.0
        %847 = vmatprep.subr.mxu0 0.0
        %848 = vmatpush1.msra.mxu0 0.0
        %849 = vmatprep.subr.mxu0 0.0
        %850 = vmatpush1.msra.mxu0 0.0
        %851 = vmatprep.subr.mxu0 0.0
        %852 = vmatpush1.msra.mxu0 0.0
        %853 = vmatprep.subr.mxu0 0.0
        %854 = vmatpush1.msra.mxu0 0.0
        %855 = vmatprep.subr.mxu0 0.0
        %856 = vmatpush1.msra.mxu0 0.0
        %857 = vmatprep.subr.mxu0 0.0
        %858 = vmatpush1.msra.mxu0 %v756
        %859 = vmatprep.subr.mxu0 0.0
        %860 = vmatpush1.msra.mxu0 %v755
        %861 = vmatprep.subr.mxu0 0.0
        %862 = vmatpush1.msra.mxu0 %v754
        %863 = vmatprep.subr.mxu0 0.0
        %864 = vmatpush1.msra.mxu0 %v753
        %865 = vmatprep.subr.mxu0 0.0
        %866 = vmatpush1.msra.mxu0 %v752
        %867 = vmatprep.subr.mxu0 0.0
        %868 = vmatpush1.msra.mxu0 %v751
        %869 = vmatprep.subr.mxu0 0.0
        %870 = vmatpush1.msra.mxu0 %v750
        %871 = vmatprep.subr.mxu0 0.0
        %872 = vmatpush1.msra.mxu0 %v749
        %873 = vmatprep.subr.mxu0 0.0
        %874 = vmatpush1.msra.mxu0 %v748
        %875 = vmatprep.subr.mxu0 0.0
        %876 = vmatpush1.msra.mxu0 %v747
        %877 = vmatprep.subr.mxu0 0.0
        %878 = vmatpush2.msra.mxu0 0.0
        %879 = vmatprep.subr.mxu0 0.0
        %880 = vmatpush2.msra.mxu0 0.0
        %881 = vmatprep.subr.mxu0 0.0
        %882 = vmatpush2.msra.mxu0 0.0
        %883 = vmatprep.subr.mxu0 0.0
        %884 = vmatpush2.msra.mxu0 0.0
        %885 = vmatprep.subr.mxu0 0.0
        %886 = vmatpush2.msra.mxu0 0.0
        %887 = vmatprep.subr.mxu0 0.0
        %888 = vmatpush2.msra.mxu0 0.0
        %889 = vmatprep.subr.mxu0 0.0
        %890 = vmatpush2.msra.mxu0 0.0
        %891 = vmatprep.subr.mxu0 0.0
        %892 = vmatpush2.msra.mxu0 0.0
        %893 = vmatprep.subr.mxu0 0.0
        %894 = vmatpush2.msra.mxu0 0.0
        %895 = vmatprep.subr.mxu0 0.0
        %896 = vmatpush2.msra.mxu0 0.0
        %897 = vmatprep.subr.mxu0 0.0
        %898 = vmatpush2.msra.mxu0 0.0
        %899 = vmatprep.subr.mxu0 0.0
        %900 = vmatpush2.msra.mxu0 0.0
        %901 = vmatprep.subr.mxu0 0.0
        %902 = vmatpush2.msra.mxu0 0.0
        %903 = vmatprep.subr.mxu0 0.0
        %904 = vmatpush2.msra.mxu0 0.0
        %905 = vmatprep.subr.mxu0 0.0
        %906 = vmatpush2.msra.mxu0 0.0
        %907 = vmatprep.subr.mxu0 0.0
        %908 = vmatpush2.msra.mxu0 0.0
        %909 = vmatprep.mubr.f32.mxu0 0.0
        %910 = vmatmul.mubr.f32.gmra.mxu0 %v843
        %v911 = vpop.f32.mrf.mxu0
        %v912 = vadd.f32 %v839, %v911
        %v913 = vpop.f32.mrf.mxu0
        %914 = vdwg.mxu0
        %v915 = vld [vmem:[#allocation3 + $0x2] sm:$0xff]
        %s916 = scalar_lea.vmem [#allocation7], 160
        %v917 = vld [vmem:[%s916] sm:$0xff]
        %v918 = vld [vmem:[%s916 + $0x8] sm:$0xff]
        %v919 = vld [vmem:[%s916 + $0x10] sm:$0xff]
        %v920 = vld [vmem:[%s916 + $0x18] sm:$0xff]
        %v921 = vld [vmem:[%s916 + $0x20] sm:$0xff]
        %v922 = vld [vmem:[%s916 + $0x28] sm:$0xff]
        %v923 = vld [vmem:[%s916 + $0x30] sm:$0xff]
        %v924 = vld [vmem:[%s916 + $0x38] sm:$0xff]
        %v925 = vld [vmem:[%s916 + $0x40] sm:$0xff]
        %v926 = vld [vmem:[%s916 + $0x48] sm:$0xff]
        %v928 = vsel %vm695, %v915, 0
        %930 = vmatprep.subr.mxu0 0.0
        %931 = vmatpush1.msra.mxu0 0.0
        %932 = vmatprep.subr.mxu0 0.0
        %933 = vmatpush1.msra.mxu0 0.0
        %934 = vmatprep.subr.mxu0 0.0
        %935 = vmatpush1.msra.mxu0 0.0
        %936 = vmatprep.subr.mxu0 0.0
        %937 = vmatpush1.msra.mxu0 0.0
        %938 = vmatprep.subr.mxu0 0.0
        %939 = vmatpush1.msra.mxu0 0.0
        %940 = vmatprep.subr.mxu0 0.0
        %941 = vmatpush1.msra.mxu0 0.0
        %942 = vmatprep.subr.mxu0 0.0
        %943 = vmatpush1.msra.mxu0 %v926
        %944 = vmatprep.subr.mxu0 0.0
        %945 = vmatpush1.msra.mxu0 %v925
        %946 = vmatprep.subr.mxu0 0.0
        %947 = vmatpush1.msra.mxu0 %v924
        %948 = vmatprep.subr.mxu0 0.0
        %949 = vmatpush1.msra.mxu0 %v923
        %950 = vmatprep.subr.mxu0 0.0
        %951 = vmatpush1.msra.mxu0 %v922
        %952 = vmatprep.subr.mxu0 0.0
        %953 = vmatpush1.msra.mxu0 %v921
        %954 = vmatprep.subr.mxu0 0.0
        %955 = vmatpush1.msra.mxu0 %v920
        %956 = vmatprep.subr.mxu0 0.0
        %957 = vmatpush1.msra.mxu0 %v919
        %958 = vmatprep.subr.mxu0 0.0
        %959 = vmatpush1.msra.mxu0 %v918
        %960 = vmatprep.subr.mxu0 0.0
        %961 = vmatpush1.msra.mxu0 %v917
        %962 = vmatprep.subr.mxu0 0.0
        %963 = vmatpush2.msra.mxu0 0.0
        %964 = vmatprep.subr.mxu0 0.0
        %965 = vmatpush2.msra.mxu0 0.0
        %966 = vmatprep.subr.mxu0 0.0
        %967 = vmatpush2.msra.mxu0 0.0
        %968 = vmatprep.subr.mxu0 0.0
        %969 = vmatpush2.msra.mxu0 0.0
        %970 = vmatprep.subr.mxu0 0.0
        %971 = vmatpush2.msra.mxu0 0.0
        %972 = vmatprep.subr.mxu0 0.0
        %973 = vmatpush2.msra.mxu0 0.0
        %974 = vmatprep.subr.mxu0 0.0
        %975 = vmatpush2.msra.mxu0 0.0
        %976 = vmatprep.subr.mxu0 0.0
        %977 = vmatpush2.msra.mxu0 0.0
        %978 = vmatprep.subr.mxu0 0.0
        %979 = vmatpush2.msra.mxu0 0.0
        %980 = vmatprep.subr.mxu0 0.0
        %981 = vmatpush2.msra.mxu0 0.0
        %982 = vmatprep.subr.mxu0 0.0
        %983 = vmatpush2.msra.mxu0 0.0
        %984 = vmatprep.subr.mxu0 0.0
        %985 = vmatpush2.msra.mxu0 0.0
        %986 = vmatprep.subr.mxu0 0.0
        %987 = vmatpush2.msra.mxu0 0.0
        %988 = vmatprep.subr.mxu0 0.0
        %989 = vmatpush2.msra.mxu0 0.0
        %990 = vmatprep.subr.mxu0 0.0
        %991 = vmatpush2.msra.mxu0 0.0
        %992 = vmatprep.subr.mxu0 0.0
        %993 = vmatpush2.msra.mxu0 0.0
        %994 = vmatprep.mubr.f32.mxu0 0.0
        %995 = vmatmul.mubr.f32.gmra.mxu0 %v928
        %v996 = vpop.f32.mrf.mxu0
        %v997 = vadd.f32 0.0, %v996
        %v998 = vpop.f32.mrf.mxu0
        %999 = vdwg.mxu0
        %v1000 = vadd.f32 %v912, %v997
        %v1001 = vld [vmem:[%s4] sm:$0x1]
        %v1003 = vlaneseq
        %v1004 = vshrl.u32 %v1003, 7
        %v1005 = vsub.s32 0, %v1004
        %v1006 = vrot.slane %v1001, %v1005
        %v1008 = vadd.f32 %v1000, %v1006
        %v1009 = vmax.f32 %v1008, 0.0
        %1010 = vst [vmem:[%s379] sm:$0xff] %v1009
        %vm1011 = vcmask 783360
        %1012 = vst.msk [vmem:[#allocation4] sm:$0x3f] %vm1011, 0.0
        %v1013 = vld [vmem:[%s379] ss:$2 sm:$0xf]
        %s1014 = scalar_lea.vmem %s379, 1
        %v1015 = vld [vmem:[%s1014] ss:$2 sm:$0xf]
        %v1016 = vmax.f32 %v1013, %v1015
        %1018 = vrot.lane.b32.xlu0 %v1016, 112
        %v1019 = vpop.permute.xlu0 %1018
        %v1021 = vmax.f32 %v1016, %v1019
        %1023 = vrot.lane.b32.xlu0 %v1021, 16
        %v1024 = vpop.permute.xlu0 %1023
        %vm1026 = vcmask 257152
        %1027 = vst.msk [vmem:[#allocation4 + $0x1] sm:$0xf] %vm1026, %v1024
        %vm1028 = vcmask 388352
        %1029 = vst.msk [vmem:[#allocation4 + $0x1] sm:$0xf] %vm1028, %v1021
        %1030 = vrot.lane.b32.xlu0 %v1021, 112
        %v1031 = vpop.permute.xlu0 %1030
        %vm1033 = vcmask 519552
        %1034 = vst.msk [vmem:[#allocation4 + $0x1] sm:$0xf] %vm1033, %v1031
        %1035 = vrot.lane.b32.xlu0 %v1021, 96
        %v1036 = vpop.permute.xlu0 %1035
        %vm1038 = vcmask 650752
        %1039 = vst.msk [vmem:[#allocation4 + $0x1] sm:$0xf] %vm1038, %v1036
        %v1040 = vld [vmem:[#allocation4] sm:$0xf]
        %v1041 = vld [vmem:[%s5] sm:$0xff]
        %v1042 = vld [vmem:[%s5 + $0x8] sm:$0xff]
        %v1043 = vld [vmem:[%s5 + $0x10] sm:$0xff]
        %v1044 = vld [vmem:[%s5 + $0x18] sm:$0xff]
        %v1045 = vld [vmem:[%s5 + $0x20] sm:$0xff]
        %v1046 = vld [vmem:[%s5 + $0x28] sm:$0xff]
        %v1047 = vld [vmem:[%s5 + $0x30] sm:$0xff]
        %v1048 = vld [vmem:[%s5 + $0x38] sm:$0xff]
        %v1049 = vld [vmem:[%s5 + $0x40] sm:$0xff]
        %v1050 = vld [vmem:[%s5 + $0x48] sm:$0xff]
        %v1051 = vld [vmem:[%s5 + $0x50] sm:$0xff]
        %v1052 = vld [vmem:[%s5 + $0x58] sm:$0xff]
        %v1053 = vld [vmem:[#allocation4 + $0x1] sm:$0xf]
        %s1054 = scalar_lea.vmem %s5, 96
        %v1055 = vld [vmem:[%s1054] sm:$0xff]
        %v1056 = vld [vmem:[%s1054 + $0x8] sm:$0xff]
        %v1057 = vld [vmem:[%s1054 + $0x10] sm:$0xff]
        %v1058 = vld [vmem:[%s1054 + $0x18] sm:$0xff]
        %v1059 = vld [vmem:[%s1054 + $0x20] sm:$0xff]
        %v1060 = vld [vmem:[%s1054 + $0x28] sm:$0xff]
        %v1061 = vld [vmem:[%s1054 + $0x30] sm:$0xff]
        %v1062 = vld [vmem:[%s1054 + $0x38] sm:$0xff]
        %v1063 = vld [vmem:[%s1054 + $0x40] sm:$0xff]
        %v1064 = vld [vmem:[%s1054 + $0x48] sm:$0xff]
        %v1065 = vld [vmem:[%s1054 + $0x50] sm:$0xff]
        %v1066 = vld [vmem:[%s1054 + $0x58] sm:$0xff]
        %vm1067 = vcmask 785408
        %v1069 = vsel %vm1067, %v1053, 0
        %1071 = vmatprep.subr.mxu0 0.0
        %1072 = vmatpush1.msra.mxu0 0.0
        %1073 = vmatprep.subr.mxu0 0.0
        %1074 = vmatpush1.msra.mxu0 0.0
        %1075 = vmatprep.subr.mxu0 0.0
        %1076 = vmatpush1.msra.mxu0 0.0
        %1077 = vmatprep.subr.mxu0 0.0
        %1078 = vmatpush1.msra.mxu0 0.0
        %1079 = vmatprep.subr.mxu0 0.0
        %1080 = vmatpush1.msra.mxu0 %v1066
        %1081 = vmatprep.subr.mxu0 0.0
        %1082 = vmatpush1.msra.mxu0 %v1065
        %1083 = vmatprep.subr.mxu0 0.0
        %1084 = vmatpush1.msra.mxu0 %v1064
        %1085 = vmatprep.subr.mxu0 0.0
        %1086 = vmatpush1.msra.mxu0 %v1063
        %1087 = vmatprep.subr.mxu0 0.0
        %1088 = vmatpush1.msra.mxu0 %v1062
        %1089 = vmatprep.subr.mxu0 0.0
        %1090 = vmatpush1.msra.mxu0 %v1061
        %1091 = vmatprep.subr.mxu0 0.0
        %1092 = vmatpush1.msra.mxu0 %v1060
        %1093 = vmatprep.subr.mxu0 0.0
        %1094 = vmatpush1.msra.mxu0 %v1059
        %1095 = vmatprep.subr.mxu0 0.0
        %1096 = vmatpush1.msra.mxu0 %v1058
        %1097 = vmatprep.subr.mxu0 0.0
        %1098 = vmatpush1.msra.mxu0 %v1057
        %1099 = vmatprep.subr.mxu0 0.0
        %1100 = vmatpush1.msra.mxu0 %v1056
        %1101 = vmatprep.subr.mxu0 0.0
        %1102 = vmatpush1.msra.mxu0 %v1055
        %1103 = vmatprep.subr.mxu0 0.0
        %1104 = vmatpush2.msra.mxu0 0.0
        %1105 = vmatprep.subr.mxu0 0.0
        %1106 = vmatpush2.msra.mxu0 0.0
        %1107 = vmatprep.subr.mxu0 0.0
        %1108 = vmatpush2.msra.mxu0 0.0
        %1109 = vmatprep.subr.mxu0 0.0
        %1110 = vmatpush2.msra.mxu0 0.0
        %1111 = vmatprep.subr.mxu0 0.0
        %1112 = vmatpush2.msra.mxu0 0.0
        %1113 = vmatprep.subr.mxu0 0.0
        %1114 = vmatpush2.msra.mxu0 0.0
        %1115 = vmatprep.subr.mxu0 0.0
        %1116 = vmatpush2.msra.mxu0 0.0
        %1117 = vmatprep.subr.mxu0 0.0
        %1118 = vmatpush2.msra.mxu0 0.0
        %1119 = vmatprep.subr.mxu0 0.0
        %1120 = vmatpush2.msra.mxu0 0.0
        %1121 = vmatprep.subr.mxu0 0.0
        %1122 = vmatpush2.msra.mxu0 0.0
        %1123 = vmatprep.subr.mxu0 0.0
        %1124 = vmatpush2.msra.mxu0 0.0
        %1125 = vmatprep.subr.mxu0 0.0
        %1126 = vmatpush2.msra.mxu0 0.0
        %1127 = vmatprep.subr.mxu0 0.0
        %1128 = vmatpush2.msra.mxu0 0.0
        %1129 = vmatprep.subr.mxu0 0.0
        %1130 = vmatpush2.msra.mxu0 0.0
        %1131 = vmatprep.subr.mxu0 0.0
        %1132 = vmatpush2.msra.mxu0 0.0
        %1133 = vmatprep.subr.mxu0 0.0
        %1134 = vmatpush2.msra.mxu0 0.0
        %1135 = vmatprep.mubr.f32.mxu0 0.0
        %1136 = vmatmul.mubr.f32.gmra.mxu0 %v1069
        %v1137 = vpop.f32.mrf.mxu0
        %v1138 = vadd.f32 0.0, %v1137
        %v1139 = vpop.f32.mrf.mxu0
        %1140 = vdwg.mxu0
        %v1142 = vsel %vm1067, %v1040, 0
        %1144 = vmatprep.subr.mxu0 0.0
        %1145 = vmatpush1.msra.mxu0 0.0
        %1146 = vmatprep.subr.mxu0 0.0
        %1147 = vmatpush1.msra.mxu0 0.0
        %1148 = vmatprep.subr.mxu0 0.0
        %1149 = vmatpush1.msra.mxu0 0.0
        %1150 = vmatprep.subr.mxu0 0.0
        %1151 = vmatpush1.msra.mxu0 0.0
        %1152 = vmatprep.subr.mxu0 0.0
        %1153 = vmatpush1.msra.mxu0 %v1052
        %1154 = vmatprep.subr.mxu0 0.0
        %1155 = vmatpush1.msra.mxu0 %v1051
        %1156 = vmatprep.subr.mxu0 0.0
        %1157 = vmatpush1.msra.mxu0 %v1050
        %1158 = vmatprep.subr.mxu0 0.0
        %1159 = vmatpush1.msra.mxu0 %v1049
        %1160 = vmatprep.subr.mxu0 0.0
        %1161 = vmatpush1.msra.mxu0 %v1048
        %1162 = vmatprep.subr.mxu0 0.0
        %1163 = vmatpush1.msra.mxu0 %v1047
        %1164 = vmatprep.subr.mxu0 0.0
        %1165 = vmatpush1.msra.mxu0 %v1046
        %1166 = vmatprep.subr.mxu0 0.0
        %1167 = vmatpush1.msra.mxu0 %v1045
        %1168 = vmatprep.subr.mxu0 0.0
        %1169 = vmatpush1.msra.mxu0 %v1044
        %1170 = vmatprep.subr.mxu0 0.0
        %1171 = vmatpush1.msra.mxu0 %v1043
        %1172 = vmatprep.subr.mxu0 0.0
        %1173 = vmatpush1.msra.mxu0 %v1042
        %1174 = vmatprep.subr.mxu0 0.0
        %1175 = vmatpush1.msra.mxu0 %v1041
        %1176 = vmatprep.subr.mxu0 0.0
        %1177 = vmatpush2.msra.mxu0 0.0
        %1178 = vmatprep.subr.mxu0 0.0
        %1179 = vmatpush2.msra.mxu0 0.0
        %1180 = vmatprep.subr.mxu0 0.0
        %1181 = vmatpush2.msra.mxu0 0.0
        %1182 = vmatprep.subr.mxu0 0.0
        %1183 = vmatpush2.msra.mxu0 0.0
        %1184 = vmatprep.subr.mxu0 0.0
        %1185 = vmatpush2.msra.mxu0 0.0
        %1186 = vmatprep.subr.mxu0 0.0
        %1187 = vmatpush2.msra.mxu0 0.0
        %1188 = vmatprep.subr.mxu0 0.0
        %1189 = vmatpush2.msra.mxu0 0.0
        %1190 = vmatprep.subr.mxu0 0.0
        %1191 = vmatpush2.msra.mxu0 0.0
        %1192 = vmatprep.subr.mxu0 0.0
        %1193 = vmatpush2.msra.mxu0 0.0
        %1194 = vmatprep.subr.mxu0 0.0
        %1195 = vmatpush2.msra.mxu0 0.0
        %1196 = vmatprep.subr.mxu0 0.0
        %1197 = vmatpush2.msra.mxu0 0.0
        %1198 = vmatprep.subr.mxu0 0.0
        %1199 = vmatpush2.msra.mxu0 0.0
        %1200 = vmatprep.subr.mxu0 0.0
        %1201 = vmatpush2.msra.mxu0 0.0
        %1202 = vmatprep.subr.mxu0 0.0
        %1203 = vmatpush2.msra.mxu0 0.0
        %1204 = vmatprep.subr.mxu0 0.0
        %1205 = vmatpush2.msra.mxu0 0.0
        %1206 = vmatprep.subr.mxu0 0.0
        %1207 = vmatpush2.msra.mxu0 0.0
        %1208 = vmatprep.mubr.f32.mxu0 0.0
        %1209 = vmatmul.mubr.f32.gmra.mxu0 %v1142
        %v1210 = vpop.f32.mrf.mxu0
        %v1211 = vadd.f32 %v1138, %v1210
        %v1212 = vpop.f32.mrf.mxu0
        %1213 = vdwg.mxu0
        %v1214 = vld [vmem:[#allocation4 + $0x2] sm:$0xf]
        %s1215 = scalar_lea.vmem %s5, 192
        %v1216 = vld [vmem:[%s1215] sm:$0xff]
        %v1217 = vld [vmem:[%s1215 + $0x8] sm:$0xff]
        %v1218 = vld [vmem:[%s1215 + $0x10] sm:$0xff]
        %v1219 = vld [vmem:[%s1215 + $0x18] sm:$0xff]
        %v1220 = vld [vmem:[%s1215 + $0x20] sm:$0xff]
        %v1221 = vld [vmem:[%s1215 + $0x28] sm:$0xff]
        %v1222 = vld [vmem:[%s1215 + $0x30] sm:$0xff]
        %v1223 = vld [vmem:[%s1215 + $0x38] sm:$0xff]
        %v1224 = vld [vmem:[%s1215 + $0x40] sm:$0xff]
        %v1225 = vld [vmem:[%s1215 + $0x48] sm:$0xff]
        %v1226 = vld [vmem:[%s1215 + $0x50] sm:$0xff]
        %v1227 = vld [vmem:[%s1215 + $0x58] sm:$0xff]
        %v1229 = vsel %vm1067, %v1214, 0
        %1231 = vmatprep.subr.mxu0 0.0
        %1232 = vmatpush1.msra.mxu0 0.0
        %1233 = vmatprep.subr.mxu0 0.0
        %1234 = vmatpush1.msra.mxu0 0.0
        %1235 = vmatprep.subr.mxu0 0.0
        %1236 = vmatpush1.msra.mxu0 0.0
        %1237 = vmatprep.subr.mxu0 0.0
        %1238 = vmatpush1.msra.mxu0 0.0
        %1239 = vmatprep.subr.mxu0 0.0
        %1240 = vmatpush1.msra.mxu0 %v1227
        %1241 = vmatprep.subr.mxu0 0.0
        %1242 = vmatpush1.msra.mxu0 %v1226
        %1243 = vmatprep.subr.mxu0 0.0
        %1244 = vmatpush1.msra.mxu0 %v1225
        %1245 = vmatprep.subr.mxu0 0.0
        %1246 = vmatpush1.msra.mxu0 %v1224
        %1247 = vmatprep.subr.mxu0 0.0
        %1248 = vmatpush1.msra.mxu0 %v1223
        %1249 = vmatprep.subr.mxu0 0.0
        %1250 = vmatpush1.msra.mxu0 %v1222
        %1251 = vmatprep.subr.mxu0 0.0
        %1252 = vmatpush1.msra.mxu0 %v1221
        %1253 = vmatprep.subr.mxu0 0.0
        %1254 = vmatpush1.msra.mxu0 %v1220
        %1255 = vmatprep.subr.mxu0 0.0
        %1256 = vmatpush1.msra.mxu0 %v1219
        %1257 = vmatprep.subr.mxu0 0.0
        %1258 = vmatpush1.msra.mxu0 %v1218
        %1259 = vmatprep.subr.mxu0 0.0
        %1260 = vmatpush1.msra.mxu0 %v1217
        %1261 = vmatprep.subr.mxu0 0.0
        %1262 = vmatpush1.msra.mxu0 %v1216
        %1263 = vmatprep.subr.mxu0 0.0
        %1264 = vmatpush2.msra.mxu0 0.0
        %1265 = vmatprep.subr.mxu0 0.0
        %1266 = vmatpush2.msra.mxu0 0.0
        %1267 = vmatprep.subr.mxu0 0.0
        %1268 = vmatpush2.msra.mxu0 0.0
        %1269 = vmatprep.subr.mxu0 0.0
        %1270 = vmatpush2.msra.mxu0 0.0
        %1271 = vmatprep.subr.mxu0 0.0
        %1272 = vmatpush2.msra.mxu0 0.0
        %1273 = vmatprep.subr.mxu0 0.0
        %1274 = vmatpush2.msra.mxu0 0.0
        %1275 = vmatprep.subr.mxu0 0.0
        %1276 = vmatpush2.msra.mxu0 0.0
        %1277 = vmatprep.subr.mxu0 0.0
        %1278 = vmatpush2.msra.mxu0 0.0
        %1279 = vmatprep.subr.mxu0 0.0
        %1280 = vmatpush2.msra.mxu0 0.0
        %1281 = vmatprep.subr.mxu0 0.0
        %1282 = vmatpush2.msra.mxu0 0.0
        %1283 = vmatprep.subr.mxu0 0.0
        %1284 = vmatpush2.msra.mxu0 0.0
        %1285 = vmatprep.subr.mxu0 0.0
        %1286 = vmatpush2.msra.mxu0 0.0
        %1287 = vmatprep.subr.mxu0 0.0
        %1288 = vmatpush2.msra.mxu0 0.0
        %1289 = vmatprep.subr.mxu0 0.0
        %1290 = vmatpush2.msra.mxu0 0.0
        %1291 = vmatprep.subr.mxu0 0.0
        %1292 = vmatpush2.msra.mxu0 0.0
        %1293 = vmatprep.subr.mxu0 0.0
        %1294 = vmatpush2.msra.mxu0 0.0
        %1295 = vmatprep.mubr.f32.mxu0 0.0
        %1296 = vmatmul.mubr.f32.gmra.mxu0 %v1229
        %v1297 = vpop.f32.mrf.mxu0
        %v1298 = vadd.f32 0.0, %v1297
        %v1299 = vpop.f32.mrf.mxu0
        %1300 = vdwg.mxu0
        %v1301 = vadd.f32 %v1211, %v1298
        %v1302 = vld [vmem:[%s6] sm:$0x1]
        %v1304 = vlaneseq
        %v1305 = vshrl.u32 %v1304, 7
        %v1306 = vsub.s32 0, %v1305
        %v1307 = vrot.slane %v1302, %v1306
        %v1309 = vadd.f32 %v1301, %v1307
        %v1310 = vmax.f32 %v1309, 0.0
        %1311 = vst [vmem:[%s383] sm:$0xf] %v1310
        %p1312 = scmp.lt.s32.totalorder %s23, 1
        %s1313 = scalar_select %p1312, %s23, 1
        %s1314 = smul.addr %s1313, 2
        %s1315 = smul.addr %s1314, 8
        %s1316 = scalar_lea.vmem %s7, %s1315
        %p1317 = scmp.lt.s32.totalorder %s23, 1
        %s1318 = scalar_select %p1317, %s23, 1
        %s1319 = smul.addr %s1318, 8
        %s1320 = scalar_lea.vmem %s8, %s1319
        %p1321 = scmp.lt.s32.totalorder %s23, 1
        %s1322 = scalar_select %p1321, %s23, 1
        %s1323 = smul.addr %s1322, 4
        %s1324 = scalar_lea.vmem %s9, %s1323
        // Predicated region
        $region57: #{fwd.1} parent=47 // pred_check
          %p1325 = pneg %p193
        $region58: #{fwd.1} parent=47 // pred_check_branch
          %1327 = sbr.rel (%p1325) target = $region60
        $region59: #{fwd.1} parent=47 // pred_region
          _
        $region60: #{fwd.1} parent=47 // pred_fallthru
          _
        // Predicated region
        $region61: #{fwd.1} parent=47 // pred_check
          %p1328 = pneg %p219
        $region62: #{fwd.1} parent=47 // pred_check_branch
          %1330 = sbr.rel (%p1328) target = $region64
        $region63: #{fwd.1} parent=47 // pred_region
          _
        $region64: #{fwd.1} parent=47 // pred_fallthru
          _
        // Predicated region
        $region65: #{fwd.1} parent=47 // pred_check
          %p1331 = pneg %p245
        $region66: #{fwd.1} parent=47 // pred_check_branch
          %1333 = sbr.rel (%p1331) target = $region68
        $region67: #{fwd.1} parent=47 // pred_region
          _
        $region68: #{fwd.1} parent=47 // pred_fallthru
          _
      $region48: #{fwd.1} parent=5 // pred_fallthru
        _
      %p1334 = scmp.le.s32.totalorder 2, %s18
      // Predicated region
      $region69: #{fwd.1} parent=5 // pred_check
        %p1335 = pneg %p1334
      $region70: #{fwd.1} parent=5 // pred_check_branch
        %1337 = sbr.rel (%p1335) target = $region72
      $region71: #{fwd.1} parent=5 // pred_region
        %s1338 = ssub.s32 %s18, 2
        // Predicated region
        $region73: #{fwd.1} parent=71 // pred_check
          %p1339 = pneg %p199
        $region74: #{fwd.1} parent=71 // pred_check_branch
          %1341 = sbr.rel (%p1339) target = $region76
        $region75: #{fwd.1} parent=71 // pred_region
          %p1342 = scmp.lt.s32.totalorder %s24, 1
          %s1343 = scalar_select %p1342, %s24, 1
          %s1344 = smul.addr %s1343, 2
          %s1345 = smul.addr %s1344, 8
          %s1346 = scalar_lea.vmem %s7, %s1345
        $region76: #{fwd.1} parent=71 // pred_fallthru
          _
        // Predicated region
        $region77: #{fwd.1} parent=71 // pred_check
          %p1347 = pneg %p225
        $region78: #{fwd.1} parent=71 // pred_check_branch
          %1349 = sbr.rel (%p1347) target = $region80
        $region79: #{fwd.1} parent=71 // pred_region
          %p1350 = scmp.lt.s32.totalorder %s24, 1
          %s1351 = scalar_select %p1350, %s24, 1
          %s1352 = smul.addr %s1351, 8
          %s1353 = scalar_lea.vmem %s8, %s1352
        $region80: #{fwd.1} parent=71 // pred_fallthru
          _
        // Predicated region
        $region81: #{fwd.1} parent=71 // pred_check
          %p1354 = pneg %p251
        $region82: #{fwd.1} parent=71 // pred_check_branch
          %1356 = sbr.rel (%p1354) target = $region84
        $region83: #{fwd.1} parent=71 // pred_region
          %p1357 = scmp.lt.s32.totalorder %s24, 1
          %s1358 = scalar_select %p1357, %s24, 1
          %s1359 = smul.addr %s1358, 4
          %s1360 = scalar_lea.vmem %s9, %s1359
        $region84: #{fwd.1} parent=71 // pred_fallthru
          _
      $region72: #{fwd.1} parent=5 // pred_fallthru
        _
    $region6: #{fwd.1} parent=1 // loop_footer
      %s22 = sadd.s32 1, %s18
    $region7: #{fwd.1} parent=1 // loop_footer_branch
      %17 = sbr.rel target = $region3
    $region8: #{fwd.1} parent=1 // loop_exit
      _
    %1361 = vsyncpa [#allocation6], 1
    %s1362 = scalar_lea.sflag [#allocation6], 1
    %1363 = vsyncpa %s1362, 1
    %1364 = vsyncpa [#allocation8], 1

</llo_original>
